<compile_context>
chip_gen: v6e
topology: v6e:2x2x1
jax: 0.10.0
libtpu: 0.0.40
codegen_flags: <defaults>
</compile_context>

<pallas_src>
import jax
import jax.numpy as jnp
from jax.experimental import pallas as pl
from jax.experimental.pallas import tpu as pltpu

HIDDEN = 32
LEAKY_SLOPE = 0.01   # nn.LeakyReLU default
BN_EPS = 1.0         # BatchNorm1d(eps=1)
LANES = 128          # lane-dense width for hidden / outputs / parameter slabs
ROW_BF16 = 16        # bf16 sublane pack
ROW_F32 = 8          # f32 sublane pack


def _round_up(n, m):
    return (n + m - 1) // m * m


class _Slab:
    """Packs many small 2-D arrays into one lane-dense [rows, 128] slab.

    Every entry is zero-padded to 128 lanes and its row count rounded up to the
    sublane pack, so all in-kernel reads are whole-tile static slices."""

    def __init__(self, dtype, row_align):
        self.dtype, self.row_align = dtype, row_align
        self.chunks, self.index, self.rows = [], {}, 0

    def add(self, name, arr):
        arr = jnp.asarray(arr, self.dtype)
        r, c = arr.shape
        rp = _round_up(max(r, 1), self.row_align)
        buf = jnp.zeros((rp, LANES), self.dtype).at[:r, :c].set(arr)
        self.index[name] = (self.rows, r)
        self.rows += rp
        self.chunks.append(buf)

    def finalize(self):
        return jnp.concatenate(self.chunks, axis=0)


def _fold_conv_params(p, inv_k):
    """Fold lin_src / lin_dst into lin_update plus the wrapper-mean 1/k factor.

    Pre-BatchNorm biases are dropped entirely: with batch statistics, a
    per-column constant shift cancels in (h - mean)/sqrt(var + eps)."""
    wu_dst = p["w_upd"][:HIDDEN, :]          # multiplies lin_dst(x_dst)
    wu_src = p["w_upd"][HIDDEN:, :]          # multiplies lin_src(aggr)
    w_src_eff = (p["w_src"] @ wu_src) * inv_k   # [F_src, H] f32
    w_dst_eff = (p["w_dst"] @ wu_dst) * inv_k   # [F_dst, H] f32
    return w_src_eff, w_dst_eff


# ---------------------------------------------------------------------------
# Fully fused forward: one pallas_call for the whole network
# ---------------------------------------------------------------------------
def hetero_gnn_forward(node_feature, adjs, params, message_types, node_types):
    """adjs[mt] is the dense 0/1 adjacency [num_dst, num_src] (edge present)."""
    node_types = tuple(node_types)
    message_types = tuple(message_types)
    dst_types = tuple(nt for nt in node_types
                      if any(mt[2] == nt for mt in message_types))
    # Layer 2 reads hidden states of src types, which only exist for dst types
    # (same implicit requirement as the PyTorch module).
    assert all(mt[0] in dst_types for mt in message_types)

    num_labels = {nt: params["post_mps"][nt]["w"].shape[1] for nt in dst_types}
    n_true = {nt: node_feature[nt].shape[0] for nt in node_types}
    n_pad = {nt: _round_up(n_true[nt], ROW_BF16) for nt in node_types}
    f_true = {nt: node_feature[nt].shape[1] for nt in node_types}
    f_pad = {nt: _round_up(f_true[nt], ROW_BF16) for nt in node_types}
    k_dst = {nt: sum(1 for mt in message_types if mt[2] == nt) for nt in dst_types}

    # Shape-driven projection order: aggregate first when the padded src feature
    # width is narrower than HIDDEN, project first otherwise (layer 2: == HIDDEN).
    proj_first = {(1, mt): f_pad[mt[0]] >= HIDDEN for mt in message_types}
    proj_first.update({(2, mt): True for mt in message_types})

    # ------------------------- host-side packing ----------------------------
    xs = []
    for nt in node_types:
        x = jnp.zeros((n_pad[nt], f_pad[nt]), jnp.bfloat16)
        xs.append(x.at[:n_true[nt], :f_true[nt]].set(
            node_feature[nt].astype(jnp.bfloat16)))

    wslab = _Slab(jnp.bfloat16, ROW_BF16)   # everything that feeds the MXU
    vslab = _Slab(jnp.float32, ROW_F32)     # f32 per-row / per-column vectors

    a01 = []
    for mt in message_types:
        src, _, dst = mt
        a = jnp.zeros((n_pad[dst], n_pad[src]), jnp.float32)
        a = a.at[:n_true[dst], :n_true[src]].set(jnp.asarray(adjs[mt], jnp.float32))
        a01.append(a.astype(jnp.bfloat16))                       # exact 0/1 mask
        deg = jnp.sum(a, axis=1, keepdims=True)
        inv_deg = jnp.where(deg > 0, 1.0 / jnp.maximum(deg, 1.0), 0.0)
        vslab.add(("inv_deg", mt), jnp.broadcast_to(inv_deg, (n_pad[dst], LANES)))

    for layer_id, key in ((1, "convs1"), (2, "convs2")):
        wdst_comb = {nt: 0.0 for nt in dst_types}
        for mt in message_types:
            src, _, dst = mt
            w_src_eff, w_dst_eff = _fold_conv_params(params[key][mt],
                                                     1.0 / float(k_dst[dst]))
            # Contraction rows must match the (padded) layer input widths.
            rs, rd = (f_pad[src], f_pad[dst]) if layer_id == 1 else (LANES, LANES)
            ws = jnp.zeros((rs, HIDDEN), jnp.float32).at[:w_src_eff.shape[0], :].set(w_src_eff)
            wd = jnp.zeros((rd, HIDDEN), jnp.float32).at[:w_dst_eff.shape[0], :].set(w_dst_eff)
            wslab.add(("w_src", layer_id, mt), ws)
            wdst_comb[dst] = wdst_comb[dst] + wd     # per-dst sum, 1/k already folded
        for nt in dst_types:
            wslab.add(("w_dst", layer_id, nt), wdst_comb[nt])

    for layer_id, key in ((1, "bns1"), (2, "bns2")):
        for nt in dst_types:
            vslab.add(("gamma", layer_id, nt), params[key][nt]["gamma"])
            vslab.add(("beta", layer_id, nt), params[key][nt]["beta"])

    for nt in dst_types:    # padded rows must stay exactly zero between layers
        m = jnp.zeros((n_pad[nt], 1), jnp.float32).at[:n_true[nt], :].set(1.0)
        vslab.add(("row_mask", nt), jnp.broadcast_to(m, (n_pad[nt], LANES)))

    for nt in dst_types:
        w = jnp.zeros((LANES, LANES), jnp.float32)
        w = w.at[:HIDDEN, :num_labels[nt]].set(params["post_mps"][nt]["w"])
        wslab.add(("post_w", nt), w)
        vslab.add(("post_b", nt), params["post_mps"][nt]["b"])

    w_slab, w_idx = wslab.finalize(), wslab.index
    v_slab, v_idx = vslab.finalize(), vslab.index

    n_x, n_a = len(node_types), len(message_types)

    # ------------------------------ kernel ----------------------------------
    def kernel(*refs):
        x_refs = refs[:n_x]
        a_refs = refs[n_x:n_x + n_a]
        w_ref, v_ref = refs[n_x + n_a], refs[n_x + n_a + 1]
        out_refs = refs[n_x + n_a + 2:]

        def W(name):    # bf16 weight slab, static tile-aligned slice
            off, rows = w_idx[name]
            return w_ref[off:off + rows, :]

        def V(name):    # f32 vector slab
            off, rows = v_idx[name]
            return v_ref[off:off + rows, :]

        a_mat = {mt: a_refs[i][...] for i, mt in enumerate(message_types)}

        def layer(x_in, layer_id):
            # dst-side term: weights of all message types into a dst were summed
            # host-side (wrapper-mean folded in) -> ONE matmul per dst type.
            h = {nt: jnp.dot(x_in[nt], W(("w_dst", layer_id, nt)),
                             preferred_element_type=jnp.float32)
                 for nt in dst_types}
            for mt in message_types:
                src, _, dst = mt
                w_s = W(("w_src", layer_id, mt))
                if proj_first[(layer_id, mt)]:
                    p = jnp.dot(x_in[src], w_s,
                                preferred_element_type=jnp.float32).astype(jnp.bfloat16)
                    agg = jnp.dot(a_mat[mt], p, preferred_element_type=jnp.float32)
                else:
                    s = jnp.dot(a_mat[mt], x_in[src],
                                preferred_element_type=jnp.float32).astype(jnp.bfloat16)
                    agg = jnp.dot(s, w_s, preferred_element_type=jnp.float32)
                # exact 'mean': 0/1 bf16 adjacency on the MXU, f32 1/deg after
                h[dst] = h[dst] + agg * V(("inv_deg", mt))

            out = {}
            for nt in dst_types:
                hh = h[nt]
                inv_n = 1.0 / float(n_true[nt])
                mean = jnp.sum(hh, axis=0, keepdims=True) * inv_n
                # Padded rows are exactly zero, so E[x^2] - mean^2 over the true
                # row count gives the biased batch variance.
                var = jnp.sum(hh * hh, axis=0, keepdims=True) * inv_n - mean * mean
                y = (hh - mean) * jax.lax.rsqrt(var + BN_EPS)
                y = y * V(("gamma", layer_id, nt)) + V(("beta", layer_id, nt))
                y = jnp.where(y >= 0, y, LEAKY_SLOPE * y)
                if layer_id == 1:
                    # keep padded rows exactly zero for layer-2 matmuls / BN stats
                    y = y * V(("row_mask", nt))
                out[nt] = y.astype(jnp.bfloat16)   # bf16 only as MXU-input format
            return out

        x0 = {nt: x_refs[i][...] for i, nt in enumerate(node_types)}
        h = layer(layer(x0, 1), 2)
        for i, nt in enumerate(dst_types):
            out_refs[i][...] = (jnp.dot(h[nt], W(("post_w", nt)),
                                        preferred_element_type=jnp.float32)
                                + V(("post_b", nt)))

    vmem = lambda: pl.BlockSpec(memory_space=pltpu.MemorySpace.VMEM)
    out_shapes = tuple(jax.ShapeDtypeStruct((n_pad[nt], LANES), jnp.float32)
                       for nt in dst_types)

    outs = pl.pallas_call(
        kernel,
        out_shape=out_shapes,
        in_specs=[vmem() for _ in range(n_x + n_a + 2)],
        out_specs=tuple(vmem() for _ in dst_types),
        compiler_params=pltpu.CompilerParams(vmem_limit_bytes=32 * 1024 * 1024),
    )(*xs, *a01, w_slab, v_slab)

    # slice row-padded, lane-dense slabs back to true node counts / label widths
    return {nt: outs[i][:n_true[nt], :num_labels[nt]]
            for i, nt in enumerate(dst_types)}


# ---------------------------------------------------------------------------
# Pure-JAX f32 reference (original, unfolded formulation, biases included)
# ---------------------------------------------------------------------------
def reference_forward(node_feature, adjs01, params, message_types, node_types):
    def conv(a01, xs, xd, p):
        deg = jnp.maximum(jnp.sum(a01, axis=1, keepdims=True), 1.0)
        aggr = (a01 @ xs) / deg
        h_src = aggr @ p["w_src"] + p["b_src"]
        h_dst = xd @ p["w_dst"] + p["b_dst"]
        cat = jnp.concatenate([h_dst, h_src], axis=-1)
        return cat @ p["w_upd"] + p["b_upd"]

    def bn_lrelu(x, p):
        mean = jnp.mean(x, axis=0, keepdims=True)
        var = jnp.mean((x - mean) ** 2, axis=0, keepdims=True)
        y = (x - mean) * jax.lax.rsqrt(var + BN_EPS) * p["gamma"] + p["beta"]
        return jnp.where(y >= 0, y, LEAKY_SLOPE * y)

    def run_layer(x_in, conv_params):
        msg = {mt: conv(adjs01[mt], x_in[mt[0]], x_in[mt[2]], conv_params[mt])
               for mt in message_types}
        out = {}
        for nt in node_types:
            embs = [v for (s, e, d), v in msg.items() if d == nt]
            if embs:
                out[nt] = embs[0] if len(embs) == 1 else jnp.mean(jnp.stack(embs), axis=0)
        return out

    x = run_layer(node_feature, params["convs1"])
    x = {nt: bn_lrelu(x[nt], params["bns1"][nt]) for nt in x}
    x = run_layer(x, params["convs2"])
    x = {nt: bn_lrelu(x[nt], params["bns2"][nt]) for nt in x}
    return {nt: x[nt] @ params["post_mps"][nt]["w"] + params["post_mps"][nt]["b"]
            for nt in x}


# ---------------------------------------------------------------------------
# Deterministic parameter / input construction
# ---------------------------------------------------------------------------
def init_linear(key, in_dim, out_dim):
    k1, k2 = jax.random.split(key)
    bound = 1.0 / float(in_dim) ** 0.5
    w = jax.random.uniform(k1, (in_dim, out_dim), jnp.float32, -bound, bound)
    b = jax.random.uniform(k2, (1, out_dim), jnp.float32, -bound, bound)
    return w, b


def init_conv_params(key, in_src, in_dst, out):
    ks = jax.random.split(key, 3)
    w_src, b_src = init_linear(ks[0], in_src, out)
    w_dst, b_dst = init_linear(ks[1], in_dst, out)
    w_upd, b_upd = init_linear(ks[2], 2 * out, out)
    return dict(w_src=w_src, b_src=b_src, w_dst=w_dst, b_dst=b_dst,
                w_upd=w_upd, b_upd=b_upd)


if __name__ == "__main__":
    key = jax.random.PRNGKey(0)

    # Small synthetic heterogeneous graph.
    node_types = ("n0", "n1")
    num_nodes = {"n0": 16, "n1": 24}
    num_feats = {"n0": 16, "n1": 8}
    num_labels = {"n0": 8, "n1": 4}
    message_types = (("n0", "e0", "n1"), ("n1", "e1", "n0"), ("n0", "e2", "n0"))

    keys = iter(jax.random.split(key, 64))

    node_feature = {
        nt: jax.random.normal(next(keys), (num_nodes[nt], num_feats[nt]), jnp.float32)
        for nt in node_types
    }

    # Dense 0/1 adjacency per message type (rows = dst, cols = src).  Both the
    # kernel and the reference derive the 'mean' 1/deg normalization from it.
    adjs = {}
    for (src, et, dst) in message_types:
        adjs[(src, et, dst)] = jax.random.bernoulli(
            next(keys), 0.3, (num_nodes[dst], num_nodes[src])).astype(jnp.float32)

    params = {
        "convs1": {
            mt: init_conv_params(next(keys), num_feats[mt[0]], num_feats[mt[2]], HIDDEN)
            for mt in message_types
        },
        "convs2": {
            mt: init_conv_params(next(keys), HIDDEN, HIDDEN, HIDDEN)
            for mt in message_types
        },
        "bns1": {nt: dict(gamma=jnp.ones((1, HIDDEN), jnp.float32),
                          beta=jnp.zeros((1, HIDDEN), jnp.float32)) for nt in node_types},
        "bns2": {nt: dict(gamma=jnp.ones((1, HIDDEN), jnp.float32),
                          beta=jnp.zeros((1, HIDDEN), jnp.float32)) for nt in node_types},
        "post_mps": {},
    }
    for nt in node_types:
        w, b = init_linear(next(keys), HIDDEN, num_labels[nt])
        params["post_mps"][nt] = dict(w=w, b=b)

    # TODO(synk): the aggr='attn' branch of HeteroGNNWrapperConv and the loss()
    # method are not part of this forward path (default aggr='mean') and are omitted.

    out = hetero_gnn_forward(node_feature, adjs, params, message_types, node_types)
    out = {nt: jax.block_until_ready(v) for nt, v in out.items()}

    # Shape / sanity checks.
    assert out["n0"].shape == (num_nodes["n0"], num_labels["n0"])
    assert out["n1"].shape == (num_nodes["n1"], num_labels["n1"])
    assert all(bool(jnp.all(jnp.isfinite(v))) for v in out.values())

    # Numerical check vs. pure-JAX f32 reference.  Tolerance tightened vs. the
    # previous version: adjacency is now an exact 0/1 mask (f32 1/deg applied
    # outside the MXU), so only bf16 operand quantization remains.
    ref = reference_forward(node_feature, adjs, params, message_types, node_types)
    for nt in out:
        assert bool(jnp.allclose(out[nt], ref[nt], atol=5e-2, rtol=5e-2)), (
            f"mismatch for node type {nt}")

    print("KERNEL_OK")
</pallas_src>

<mosaic_0001>
module attributes {stable_mosaic.version = 11 : i64} {
  func.func @kernel(%arg0: memref<16x16xbf16, #tpu.memory_space<vmem>>, %arg1: memref<32x16xbf16, #tpu.memory_space<vmem>>, %arg2: memref<32x16xbf16, #tpu.memory_space<vmem>>, %arg3: memref<16x32xbf16, #tpu.memory_space<vmem>>, %arg4: memref<16x16xbf16, #tpu.memory_space<vmem>>, %arg5: memref<976x128xbf16, #tpu.memory_space<vmem>>, %arg6: memref<192x128xf32, #tpu.memory_space<vmem>>, %arg7: memref<16x128xf32, #tpu.memory_space<vmem>>, %arg8: memref<32x128xf32, #tpu.memory_space<vmem>>) attributes {dimension_semantics = [], scalar_prefetch = 0 : i64, scratch_operands = 0 : i64, tpu.core_type = #tpu.core_type<tc>} {
    %c0 = arith.constant 0 : index
    %c0_0 = arith.constant 0 : index
    %0 = vector.load %arg2[%c0, %c0_0] : memref<32x16xbf16, #tpu.memory_space<vmem>>, vector<32x16xbf16>
    %c0_1 = arith.constant 0 : index
    %c0_2 = arith.constant 0 : index
    %1 = vector.load %arg3[%c0_1, %c0_2] : memref<16x32xbf16, #tpu.memory_space<vmem>>, vector<16x32xbf16>
    %c0_3 = arith.constant 0 : index
    %c0_4 = arith.constant 0 : index
    %2 = vector.load %arg4[%c0_3, %c0_4] : memref<16x16xbf16, #tpu.memory_space<vmem>>, vector<16x16xbf16>
    %c0_5 = arith.constant 0 : index
    %c0_6 = arith.constant 0 : index
    %3 = vector.load %arg0[%c0_5, %c0_6] : memref<16x16xbf16, #tpu.memory_space<vmem>>, vector<16x16xbf16>
    %c0_7 = arith.constant 0 : index
    %c0_8 = arith.constant 0 : index
    %4 = vector.load %arg1[%c0_7, %c0_8] : memref<32x16xbf16, #tpu.memory_space<vmem>>, vector<32x16xbf16>
    %c48 = arith.constant 48 : index
    %c0_9 = arith.constant 0 : index
    %5 = vector.load %arg5[%c48, %c0_9] : memref<976x128xbf16, #tpu.memory_space<vmem>>, vector<16x128xbf16>
    %cst = arith.constant dense<0.000000e+00> : vector<16x128xf32>
    %6 = tpu.matmul %3, %5, %cst {dimension_numbers = #tpu.dot_dimension_numbers<[1], [0], [0], [1], [0, 0, 1, 1], [], []>} : vector<16x16xbf16>, vector<16x128xbf16>, vector<16x128xf32> -> vector<16x128xf32>
    %c64 = arith.constant 64 : index
    %c0_10 = arith.constant 0 : index
    %7 = vector.load %arg5[%c64, %c0_10] : memref<976x128xbf16, #tpu.memory_space<vmem>>, vector<16x128xbf16>
    %cst_11 = arith.constant dense<0.000000e+00> : vector<32x128xf32>
    %8 = tpu.matmul %4, %7, %cst_11 {dimension_numbers = #tpu.dot_dimension_numbers<[1], [0], [0], [1], [0, 0, 1, 1], [], []>} : vector<32x16xbf16>, vector<16x128xbf16>, vector<32x128xf32> -> vector<32x128xf32>
    %c0_12 = arith.constant 0 : index
    %c0_13 = arith.constant 0 : index
    %9 = vector.load %arg5[%c0_12, %c0_13] : memref<976x128xbf16, #tpu.memory_space<vmem>>, vector<16x128xbf16>
    %cst_14 = arith.constant dense<0.000000e+00> : vector<32x16xf32>
    %10 = tpu.matmul %0, %3, %cst_14 {dimension_numbers = #tpu.dot_dimension_numbers<[1], [0], [0], [1], [0, 0, 1, 1], [], []>} : vector<32x16xbf16>, vector<16x16xbf16>, vector<32x16xf32> -> vector<32x16xf32>
    %11 = arith.truncf %10 : vector<32x16xf32> to vector<32x16xbf16>
    %cst_15 = arith.constant dense<0.000000e+00> : vector<32x128xf32>
    %12 = tpu.matmul %11, %9, %cst_15 {dimension_numbers = #tpu.dot_dimension_numbers<[1], [0], [0], [1], [0, 0, 1, 1], [], []>} : vector<32x16xbf16>, vector<16x128xbf16>, vector<32x128xf32> -> vector<32x128xf32>
    %c0_16 = arith.constant 0 : index
    %c0_17 = arith.constant 0 : index
    %13 = vector.load %arg6[%c0_16, %c0_17] : memref<192x128xf32, #tpu.memory_space<vmem>>, vector<32x128xf32>
    %14 = arith.mulf %12, %13 : vector<32x128xf32>
    %15 = arith.addf %8, %14 : vector<32x128xf32>
    %c16 = arith.constant 16 : index
    %c0_18 = arith.constant 0 : index
    %16 = vector.load %arg5[%c16, %c0_18] : memref<976x128xbf16, #tpu.memory_space<vmem>>, vector<16x128xbf16>
    %cst_19 = arith.constant dense<0.000000e+00> : vector<16x16xf32>
    %17 = tpu.matmul %1, %4, %cst_19 {dimension_numbers = #tpu.dot_dimension_numbers<[1], [0], [0], [1], [0, 0, 1, 1], [], []>} : vector<16x32xbf16>, vector<32x16xbf16>, vector<16x16xf32> -> vector<16x16xf32>
    %18 = arith.truncf %17 : vector<16x16xf32> to vector<16x16xbf16>
    %cst_20 = arith.constant dense<0.000000e+00> : vector<16x128xf32>
    %19 = tpu.matmul %18, %16, %cst_20 {dimension_numbers = #tpu.dot_dimension_numbers<[1], [0], [0], [1], [0, 0, 1, 1], [], []>} : vector<16x16xbf16>, vector<16x128xbf16>, vector<16x128xf32> -> vector<16x128xf32>
    %c32 = arith.constant 32 : index
    %c0_21 = arith.constant 0 : index
    %20 = vector.load %arg6[%c32, %c0_21] : memref<192x128xf32, #tpu.memory_space<vmem>>, vector<16x128xf32>
    %21 = arith.mulf %19, %20 : vector<16x128xf32>
    %22 = arith.addf %6, %21 : vector<16x128xf32>
    %c32_22 = arith.constant 32 : index
    %c0_23 = arith.constant 0 : index
    %23 = vector.load %arg5[%c32_22, %c0_23] : memref<976x128xbf16, #tpu.memory_space<vmem>>, vector<16x128xbf16>
    %cst_24 = arith.constant dense<0.000000e+00> : vector<16x16xf32>
    %24 = tpu.matmul %2, %3, %cst_24 {dimension_numbers = #tpu.dot_dimension_numbers<[1], [0], [0], [1], [0, 0, 1, 1], [], []>} : vector<16x16xbf16>, vector<16x16xbf16>, vector<16x16xf32> -> vector<16x16xf32>
    %25 = arith.truncf %24 : vector<16x16xf32> to vector<16x16xbf16>
    %cst_25 = arith.constant dense<0.000000e+00> : vector<16x128xf32>
    %26 = tpu.matmul %25, %23, %cst_25 {dimension_numbers = #tpu.dot_dimension_numbers<[1], [0], [0], [1], [0, 0, 1, 1], [], []>} : vector<16x16xbf16>, vector<16x128xbf16>, vector<16x128xf32> -> vector<16x128xf32>
    %c48_26 = arith.constant 48 : index
    %c0_27 = arith.constant 0 : index
    %27 = vector.load %arg6[%c48_26, %c0_27] : memref<192x128xf32, #tpu.memory_space<vmem>>, vector<16x128xf32>
    %28 = arith.mulf %26, %27 : vector<16x128xf32>
    %29 = arith.addf %22, %28 : vector<16x128xf32>
    %cst_28 = arith.constant dense<0.000000e+00> : vector<128xf32>
    %30 = vector.multi_reduction <add>, %29, %cst_28 [0] : vector<16x128xf32> to vector<128xf32>
    %31 = vector.shape_cast %30 : vector<128xf32> to vector<1x128xf32>
    %cst_29 = arith.constant 6.250000e-02 : f32
    %32 = vector.broadcast %cst_29 : f32 to vector<1x128xf32>
    %33 = arith.mulf %31, %32 : vector<1x128xf32>
    %34 = arith.mulf %29, %29 : vector<16x128xf32>
    %cst_30 = arith.constant dense<0.000000e+00> : vector<128xf32>
    %35 = vector.multi_reduction <add>, %34, %cst_30 [0] : vector<16x128xf32> to vector<128xf32>
    %36 = vector.shape_cast %35 : vector<128xf32> to vector<1x128xf32>
    %cst_31 = arith.constant 6.250000e-02 : f32
    %37 = vector.broadcast %cst_31 : f32 to vector<1x128xf32>
    %38 = arith.mulf %36, %37 : vector<1x128xf32>
    %39 = arith.mulf %33, %33 : vector<1x128xf32>
    %40 = arith.subf %38, %39 : vector<1x128xf32>
    %41 = vector.broadcast %33 : vector<1x128xf32> to vector<16x128xf32>
    %42 = arith.subf %29, %41 : vector<16x128xf32>
    %cst_32 = arith.constant 1.000000e+00 : f32
    %43 = vector.broadcast %cst_32 : f32 to vector<1x128xf32>
    %44 = arith.addf %40, %43 : vector<1x128xf32>
    %45 = math.rsqrt %44 : vector<1x128xf32>
    %46 = vector.broadcast %45 : vector<1x128xf32> to vector<16x128xf32>
    %47 = arith.mulf %42, %46 : vector<16x128xf32>
    %c64_33 = arith.constant 64 : index
    %c0_34 = arith.constant 0 : index
    %48 = vector.load %arg6[%c64_33, %c0_34] : memref<192x128xf32, #tpu.memory_space<vmem>>, vector<1x128xf32>
    %49 = vector.broadcast %48 : vector<1x128xf32> to vector<16x128xf32>
    %50 = arith.mulf %47, %49 : vector<16x128xf32>
    %c72 = arith.constant 72 : index
    %c0_35 = arith.constant 0 : index
    %51 = vector.load %arg6[%c72, %c0_35] : memref<192x128xf32, #tpu.memory_space<vmem>>, vector<1x128xf32>
    %52 = vector.broadcast %51 : vector<1x128xf32> to vector<16x128xf32>
    %53 = arith.addf %50, %52 : vector<16x128xf32>
    %cst_36 = arith.constant 0.000000e+00 : f32
    %54 = vector.broadcast %cst_36 : f32 to vector<16x128xf32>
    %55 = arith.cmpf oge, %53, %54 : vector<16x128xf32>
    %cst_37 = arith.constant 0.00999999977 : f32
    %56 = vector.broadcast %cst_37 : f32 to vector<16x128xf32>
    %57 = arith.mulf %56, %53 : vector<16x128xf32>
    %58 = arith.select %55, %53, %57 : vector<16x128xi1>, vector<16x128xf32>
    %c128 = arith.constant 128 : index
    %c0_38 = arith.constant 0 : index
    %59 = vector.load %arg6[%c128, %c0_38] : memref<192x128xf32, #tpu.memory_space<vmem>>, vector<16x128xf32>
    %60 = arith.mulf %58, %59 : vector<16x128xf32>
    %61 = arith.truncf %60 : vector<16x128xf32> to vector<16x128xbf16>
    %cst_39 = arith.constant dense<0.000000e+00> : vector<128xf32>
    %62 = vector.multi_reduction <add>, %15, %cst_39 [0] : vector<32x128xf32> to vector<128xf32>
    %63 = vector.shape_cast %62 : vector<128xf32> to vector<1x128xf32>
    %cst_40 = arith.constant 0.0416666679 : f32
    %64 = vector.broadcast %cst_40 : f32 to vector<1x128xf32>
    %65 = arith.mulf %63, %64 : vector<1x128xf32>
    %66 = arith.mulf %15, %15 : vector<32x128xf32>
    %cst_41 = arith.constant dense<0.000000e+00> : vector<128xf32>
    %67 = vector.multi_reduction <add>, %66, %cst_41 [0] : vector<32x128xf32> to vector<128xf32>
    %68 = vector.shape_cast %67 : vector<128xf32> to vector<1x128xf32>
    %cst_42 = arith.constant 0.0416666679 : f32
    %69 = vector.broadcast %cst_42 : f32 to vector<1x128xf32>
    %70 = arith.mulf %68, %69 : vector<1x128xf32>
    %71 = arith.mulf %65, %65 : vector<1x128xf32>
    %72 = arith.subf %70, %71 : vector<1x128xf32>
    %73 = vector.broadcast %65 : vector<1x128xf32> to vector<32x128xf32>
    %74 = arith.subf %15, %73 : vector<32x128xf32>
    %cst_43 = arith.constant 1.000000e+00 : f32
    %75 = vector.broadcast %cst_43 : f32 to vector<1x128xf32>
    %76 = arith.addf %72, %75 : vector<1x128xf32>
    %77 = math.rsqrt %76 : vector<1x128xf32>
    %78 = vector.broadcast %77 : vector<1x128xf32> to vector<32x128xf32>
    %79 = arith.mulf %74, %78 : vector<32x128xf32>
    %c80 = arith.constant 80 : index
    %c0_44 = arith.constant 0 : index
    %80 = vector.load %arg6[%c80, %c0_44] : memref<192x128xf32, #tpu.memory_space<vmem>>, vector<1x128xf32>
    %81 = vector.broadcast %80 : vector<1x128xf32> to vector<32x128xf32>
    %82 = arith.mulf %79, %81 : vector<32x128xf32>
    %c88 = arith.constant 88 : index
    %c0_45 = arith.constant 0 : index
    %83 = vector.load %arg6[%c88, %c0_45] : memref<192x128xf32, #tpu.memory_space<vmem>>, vector<1x128xf32>
    %84 = vector.broadcast %83 : vector<1x128xf32> to vector<32x128xf32>
    %85 = arith.addf %82, %84 : vector<32x128xf32>
    %cst_46 = arith.constant 0.000000e+00 : f32
    %86 = vector.broadcast %cst_46 : f32 to vector<32x128xf32>
    %87 = arith.cmpf oge, %85, %86 : vector<32x128xf32>
    %cst_47 = arith.constant 0.00999999977 : f32
    %88 = vector.broadcast %cst_47 : f32 to vector<32x128xf32>
    %89 = arith.mulf %88, %85 : vector<32x128xf32>
    %90 = arith.select %87, %85, %89 : vector<32x128xi1>, vector<32x128xf32>
    %c144 = arith.constant 144 : index
    %c0_48 = arith.constant 0 : index
    %91 = vector.load %arg6[%c144, %c0_48] : memref<192x128xf32, #tpu.memory_space<vmem>>, vector<32x128xf32>
    %92 = arith.mulf %90, %91 : vector<32x128xf32>
    %93 = arith.truncf %92 : vector<32x128xf32> to vector<32x128xbf16>
    %c464 = arith.constant 464 : index
    %c0_49 = arith.constant 0 : index
    %94 = vector.load %arg5[%c464, %c0_49] : memref<976x128xbf16, #tpu.memory_space<vmem>>, vector<128x128xbf16>
    %cst_50 = arith.constant dense<0.000000e+00> : vector<16x128xf32>
    %95 = tpu.matmul %61, %94, %cst_50 {dimension_numbers = #tpu.dot_dimension_numbers<[1], [0], [0], [1], [0, 0, 1, 1], [], []>} : vector<16x128xbf16>, vector<128x128xbf16>, vector<16x128xf32> -> vector<16x128xf32>
    %c592 = arith.constant 592 : index
    %c0_51 = arith.constant 0 : index
    %96 = vector.load %arg5[%c592, %c0_51] : memref<976x128xbf16, #tpu.memory_space<vmem>>, vector<128x128xbf16>
    %cst_52 = arith.constant dense<0.000000e+00> : vector<32x128xf32>
    %97 = tpu.matmul %93, %96, %cst_52 {dimension_numbers = #tpu.dot_dimension_numbers<[1], [0], [0], [1], [0, 0, 1, 1], [], []>} : vector<32x128xbf16>, vector<128x128xbf16>, vector<32x128xf32> -> vector<32x128xf32>
    %c80_53 = arith.constant 80 : index
    %c0_54 = arith.constant 0 : index
    %98 = vector.load %arg5[%c80_53, %c0_54] : memref<976x128xbf16, #tpu.memory_space<vmem>>, vector<128x128xbf16>
    %cst_55 = arith.constant dense<0.000000e+00> : vector<16x128xf32>
    %99 = tpu.matmul %61, %98, %cst_55 {dimension_numbers = #tpu.dot_dimension_numbers<[1], [0], [0], [1], [0, 0, 1, 1], [], []>} : vector<16x128xbf16>, vector<128x128xbf16>, vector<16x128xf32> -> vector<16x128xf32>
    %100 = arith.truncf %99 : vector<16x128xf32> to vector<16x128xbf16>
    %cst_56 = arith.constant dense<0.000000e+00> : vector<32x128xf32>
    %101 = tpu.matmul %0, %100, %cst_56 {dimension_numbers = #tpu.dot_dimension_numbers<[1], [0], [0], [1], [0, 0, 1, 1], [], []>} : vector<32x16xbf16>, vector<16x128xbf16>, vector<32x128xf32> -> vector<32x128xf32>
    %c0_57 = arith.constant 0 : index
    %c0_58 = arith.constant 0 : index
    %102 = vector.load %arg6[%c0_57, %c0_58] : memref<192x128xf32, #tpu.memory_space<vmem>>, vector<32x128xf32>
    %103 = arith.mulf %101, %102 : vector<32x128xf32>
    %104 = arith.addf %97, %103 : vector<32x128xf32>
    %c208 = arith.constant 208 : index
    %c0_59 = arith.constant 0 : index
    %105 = vector.load %arg5[%c208, %c0_59] : memref<976x128xbf16, #tpu.memory_space<vmem>>, vector<128x128xbf16>
    %cst_60 = arith.constant dense<0.000000e+00> : vector<32x128xf32>
    %106 = tpu.matmul %93, %105, %cst_60 {dimension_numbers = #tpu.dot_dimension_numbers<[1], [0], [0], [1], [0, 0, 1, 1], [], []>} : vector<32x128xbf16>, vector<128x128xbf16>, vector<32x128xf32> -> vector<32x128xf32>
    %107 = arith.truncf %106 : vector<32x128xf32> to vector<32x128xbf16>
    %cst_61 = arith.constant dense<0.000000e+00> : vector<16x128xf32>
    %108 = tpu.matmul %1, %107, %cst_61 {dimension_numbers = #tpu.dot_dimension_numbers<[1], [0], [0], [1], [0, 0, 1, 1], [], []>} : vector<16x32xbf16>, vector<32x128xbf16>, vector<16x128xf32> -> vector<16x128xf32>
    %c32_62 = arith.constant 32 : index
    %c0_63 = arith.constant 0 : index
    %109 = vector.load %arg6[%c32_62, %c0_63] : memref<192x128xf32, #tpu.memory_space<vmem>>, vector<16x128xf32>
    %110 = arith.mulf %108, %109 : vector<16x128xf32>
    %111 = arith.addf %95, %110 : vector<16x128xf32>
    %c336 = arith.constant 336 : index
    %c0_64 = arith.constant 0 : index
    %112 = vector.load %arg5[%c336, %c0_64] : memref<976x128xbf16, #tpu.memory_space<vmem>>, vector<128x128xbf16>
    %cst_65 = arith.constant dense<0.000000e+00> : vector<16x128xf32>
    %113 = tpu.matmul %61, %112, %cst_65 {dimension_numbers = #tpu.dot_dimension_numbers<[1], [0], [0], [1], [0, 0, 1, 1], [], []>} : vector<16x128xbf16>, vector<128x128xbf16>, vector<16x128xf32> -> vector<16x128xf32>
    %114 = arith.truncf %113 : vector<16x128xf32> to vector<16x128xbf16>
    %cst_66 = arith.constant dense<0.000000e+00> : vector<16x128xf32>
    %115 = tpu.matmul %2, %114, %cst_66 {dimension_numbers = #tpu.dot_dimension_numbers<[1], [0], [0], [1], [0, 0, 1, 1], [], []>} : vector<16x16xbf16>, vector<16x128xbf16>, vector<16x128xf32> -> vector<16x128xf32>
    %c48_67 = arith.constant 48 : index
    %c0_68 = arith.constant 0 : index
    %116 = vector.load %arg6[%c48_67, %c0_68] : memref<192x128xf32, #tpu.memory_space<vmem>>, vector<16x128xf32>
    %117 = arith.mulf %115, %116 : vector<16x128xf32>
    %118 = arith.addf %111, %117 : vector<16x128xf32>
    %cst_69 = arith.constant dense<0.000000e+00> : vector<128xf32>
    %119 = vector.multi_reduction <add>, %118, %cst_69 [0] : vector<16x128xf32> to vector<128xf32>
    %120 = vector.shape_cast %119 : vector<128xf32> to vector<1x128xf32>
    %cst_70 = arith.constant 6.250000e-02 : f32
    %121 = vector.broadcast %cst_70 : f32 to vector<1x128xf32>
    %122 = arith.mulf %120, %121 : vector<1x128xf32>
    %123 = arith.mulf %118, %118 : vector<16x128xf32>
    %cst_71 = arith.constant dense<0.000000e+00> : vector<128xf32>
    %124 = vector.multi_reduction <add>, %123, %cst_71 [0] : vector<16x128xf32> to vector<128xf32>
    %125 = vector.shape_cast %124 : vector<128xf32> to vector<1x128xf32>
    %cst_72 = arith.constant 6.250000e-02 : f32
    %126 = vector.broadcast %cst_72 : f32 to vector<1x128xf32>
    %127 = arith.mulf %125, %126 : vector<1x128xf32>
    %128 = arith.mulf %122, %122 : vector<1x128xf32>
    %129 = arith.subf %127, %128 : vector<1x128xf32>
    %130 = vector.broadcast %122 : vector<1x128xf32> to vector<16x128xf32>
    %131 = arith.subf %118, %130 : vector<16x128xf32>
    %cst_73 = arith.constant 1.000000e+00 : f32
    %132 = vector.broadcast %cst_73 : f32 to vector<1x128xf32>
    %133 = arith.addf %129, %132 : vector<1x128xf32>
    %134 = math.rsqrt %133 : vector<1x128xf32>
    %135 = vector.broadcast %134 : vector<1x128xf32> to vector<16x128xf32>
    %136 = arith.mulf %131, %135 : vector<16x128xf32>
    %c96 = arith.constant 96 : index
    %c0_74 = arith.constant 0 : index
    %137 = vector.load %arg6[%c96, %c0_74] : memref<192x128xf32, #tpu.memory_space<vmem>>, vector<1x128xf32>
    %138 = vector.broadcast %137 : vector<1x128xf32> to vector<16x128xf32>
    %139 = arith.mulf %136, %138 : vector<16x128xf32>
    %c104 = arith.constant 104 : index
    %c0_75 = arith.constant 0 : index
    %140 = vector.load %arg6[%c104, %c0_75] : memref<192x128xf32, #tpu.memory_space<vmem>>, vector<1x128xf32>
    %141 = vector.broadcast %140 : vector<1x128xf32> to vector<16x128xf32>
    %142 = arith.addf %139, %141 : vector<16x128xf32>
    %cst_76 = arith.constant 0.000000e+00 : f32
    %143 = vector.broadcast %cst_76 : f32 to vector<16x128xf32>
    %144 = arith.cmpf oge, %142, %143 : vector<16x128xf32>
    %cst_77 = arith.constant 0.00999999977 : f32
    %145 = vector.broadcast %cst_77 : f32 to vector<16x128xf32>
    %146 = arith.mulf %145, %142 : vector<16x128xf32>
    %147 = arith.select %144, %142, %146 : vector<16x128xi1>, vector<16x128xf32>
    %148 = arith.truncf %147 : vector<16x128xf32> to vector<16x128xbf16>
    %cst_78 = arith.constant dense<0.000000e+00> : vector<128xf32>
    %149 = vector.multi_reduction <add>, %104, %cst_78 [0] : vector<32x128xf32> to vector<128xf32>
    %150 = vector.shape_cast %149 : vector<128xf32> to vector<1x128xf32>
    %cst_79 = arith.constant 0.0416666679 : f32
    %151 = vector.broadcast %cst_79 : f32 to vector<1x128xf32>
    %152 = arith.mulf %150, %151 : vector<1x128xf32>
    %153 = arith.mulf %104, %104 : vector<32x128xf32>
    %cst_80 = arith.constant dense<0.000000e+00> : vector<128xf32>
    %154 = vector.multi_reduction <add>, %153, %cst_80 [0] : vector<32x128xf32> to vector<128xf32>
    %155 = vector.shape_cast %154 : vector<128xf32> to vector<1x128xf32>
    %cst_81 = arith.constant 0.0416666679 : f32
    %156 = vector.broadcast %cst_81 : f32 to vector<1x128xf32>
    %157 = arith.mulf %155, %156 : vector<1x128xf32>
    %158 = arith.mulf %152, %152 : vector<1x128xf32>
    %159 = arith.subf %157, %158 : vector<1x128xf32>
    %160 = vector.broadcast %152 : vector<1x128xf32> to vector<32x128xf32>
    %161 = arith.subf %104, %160 : vector<32x128xf32>
    %cst_82 = arith.constant 1.000000e+00 : f32
    %162 = vector.broadcast %cst_82 : f32 to vector<1x128xf32>
    %163 = arith.addf %159, %162 : vector<1x128xf32>
    %164 = math.rsqrt %163 : vector<1x128xf32>
    %165 = vector.broadcast %164 : vector<1x128xf32> to vector<32x128xf32>
    %166 = arith.mulf %161, %165 : vector<32x128xf32>
    %c112 = arith.constant 112 : index
    %c0_83 = arith.constant 0 : index
    %167 = vector.load %arg6[%c112, %c0_83] : memref<192x128xf32, #tpu.memory_space<vmem>>, vector<1x128xf32>
    %168 = vector.broadcast %167 : vector<1x128xf32> to vector<32x128xf32>
    %169 = arith.mulf %166, %168 : vector<32x128xf32>
    %c120 = arith.constant 120 : index
    %c0_84 = arith.constant 0 : index
    %170 = vector.load %arg6[%c120, %c0_84] : memref<192x128xf32, #tpu.memory_space<vmem>>, vector<1x128xf32>
    %171 = vector.broadcast %170 : vector<1x128xf32> to vector<32x128xf32>
    %172 = arith.addf %169, %171 : vector<32x128xf32>
    %cst_85 = arith.constant 0.000000e+00 : f32
    %173 = vector.broadcast %cst_85 : f32 to vector<32x128xf32>
    %174 = arith.cmpf oge, %172, %173 : vector<32x128xf32>
    %cst_86 = arith.constant 0.00999999977 : f32
    %175 = vector.broadcast %cst_86 : f32 to vector<32x128xf32>
    %176 = arith.mulf %175, %172 : vector<32x128xf32>
    %177 = arith.select %174, %172, %176 : vector<32x128xi1>, vector<32x128xf32>
    %178 = arith.truncf %177 : vector<32x128xf32> to vector<32x128xbf16>
    %c720 = arith.constant 720 : index
    %c0_87 = arith.constant 0 : index
    %179 = vector.load %arg5[%c720, %c0_87] : memref<976x128xbf16, #tpu.memory_space<vmem>>, vector<128x128xbf16>
    %cst_88 = arith.constant dense<0.000000e+00> : vector<16x128xf32>
    %180 = tpu.matmul %148, %179, %cst_88 {dimension_numbers = #tpu.dot_dimension_numbers<[1], [0], [0], [1], [0, 0, 1, 1], [], []>} : vector<16x128xbf16>, vector<128x128xbf16>, vector<16x128xf32> -> vector<16x128xf32>
    %c176 = arith.constant 176 : index
    %c0_89 = arith.constant 0 : index
    %181 = vector.load %arg6[%c176, %c0_89] : memref<192x128xf32, #tpu.memory_space<vmem>>, vector<1x128xf32>
    %182 = vector.broadcast %181 : vector<1x128xf32> to vector<16x128xf32>
    %183 = arith.addf %180, %182 : vector<16x128xf32>
    %c0_90 = arith.constant 0 : index
    %c0_91 = arith.constant 0 : index
    %184 = vector.load %arg7[%c0_90, %c0_91] : memref<16x128xf32, #tpu.memory_space<vmem>>, vector<16x128xf32>
    tpu.vector_store %arg7[%c0_90, %c0_91], %183 {strides = array<i32>} : memref<16x128xf32, #tpu.memory_space<vmem>>, vector<16x128xf32>,
    %c848 = arith.constant 848 : index
    %c0_92 = arith.constant 0 : index
    %185 = vector.load %arg5[%c848, %c0_92] : memref<976x128xbf16, #tpu.memory_space<vmem>>, vector<128x128xbf16>
    %cst_93 = arith.constant dense<0.000000e+00> : vector<32x128xf32>
    %186 = tpu.matmul %178, %185, %cst_93 {dimension_numbers = #tpu.dot_dimension_numbers<[1], [0], [0], [1], [0, 0, 1, 1], [], []>} : vector<32x128xbf16>, vector<128x128xbf16>, vector<32x128xf32> -> vector<32x128xf32>
    %c184 = arith.constant 184 : index
    %c0_94 = arith.constant 0 : index
    %187 = vector.load %arg6[%c184, %c0_94] : memref<192x128xf32, #tpu.memory_space<vmem>>, vector<1x128xf32>
    %188 = vector.broadcast %187 : vector<1x128xf32> to vector<32x128xf32>
    %189 = arith.addf %186, %188 : vector<32x128xf32>
    %c0_95 = arith.constant 0 : index
    %c0_96 = arith.constant 0 : index
    %190 = vector.load %arg8[%c0_95, %c0_96] : memref<32x128xf32, #tpu.memory_space<vmem>>, vector<32x128xf32>
    tpu.vector_store %arg8[%c0_95, %c0_96], %189 {strides = array<i32>} : memref<32x128xf32, #tpu.memory_space<vmem>>, vector<32x128xf32>,
    return
  }
}

</mosaic_0001>

<llo_original>
// kernel: tpu_custom_call.1
$region0: #{tpu_custom_call.1}
  #allocation0 [shape = 'u32[]', space=smem, size = 0x4, offset = 0x4, fixed_abs, tag = 'smem constant byte address 0x4 - core index']
  #allocation1 [shape = 'u32[144,128]{1,0:T(1,128)}', space=vmem, size = 0x12000, scoped, tag = 'internal scratch']
  %s0 = inlined_call_operand.vmem [shape: bf16[16,16], index: 0, kind: input, shape index: {}]
  %s1 = inlined_call_operand.vmem [shape: bf16[32,16], index: 1, kind: input, shape index: {}]
  %s2 = inlined_call_operand.vmem [shape: bf16[32,16], index: 2, kind: input, shape index: {}]
  %s3 = inlined_call_operand.vmem [shape: bf16[16,32], index: 3, kind: input, shape index: {}]
  %s4 = inlined_call_operand.vmem [shape: bf16[16,16], index: 4, kind: input, shape index: {}]
  %s5 = inlined_call_operand.hbm [shape: bf16[976,128], index: 5, kind: input, shape index: {}]
  %s6 = inlined_call_operand.hbm [shape: f32[192,128], index: 6, kind: input, shape index: {}]
  %s7 = inlined_call_operand.hbm [shape: f32[16,128], index: 7, kind: output, shape index: {0}]
  %s8 = inlined_call_operand.hbm [shape: f32[32,128], index: 8, kind: output, shape index: {1}]
  %9 = xla_tuple %s7, %s8
  %s10 = sld [smem:[#allocation0]]
  $region54: #{tpu_custom_call.1} parent=0
    _
  %s12 = ssub.s32 1, %s10
  %s13 = scalar_select 0, %s12, %s10
  $region1: #{tpu_custom_call.1} parent=0
    #allocation2 [shape = 'u8[249856]{0}', space=vmem, size = 0x3d000, scoped, tag = 'input window, operand 5, single buffered']
    #allocation3 [shape = 's32[1]{0}', space=sflag, size = 0x4, scoped, tag = 'scoped memory for tpu_custom_call.1']
    #allocation4 [shape = 's32[1]{0}', space=sflag, size = 0x4, scoped, tag = 'scoped memory for tpu_custom_call.1']
    #allocation5 [shape = 'u8[98304]{0}', space=vmem, size = 0x18000, scoped, tag = 'input window, operand 6, single buffered']
    #allocation6 [shape = 's32[1]{0}', space=sflag, size = 0x4, scoped, tag = 'scoped memory for tpu_custom_call.1']
    #allocation7 [shape = 'u8[8192]{0}', space=vmem, size = 0x2000, scoped, tag = 'output window, operand 0, single buffered']
    #allocation8 [shape = 'u8[16384]{0}', space=vmem, size = 0x4000, scoped, tag = 'output window, operand 1, single buffered']
    #allocation9 [shape = 's32[1]{0}', space=sflag, size = 0x4, scoped, tag = 'scoped memory for tpu_custom_call.1']
    %14 = vsyncpa [#allocation3], 0
    %15 = vsyncpa [#allocation6], 0
    %16 = vsyncpa [#allocation4], 0
    %17 = vsyncpa [#allocation9], 0
    // Predicated region
    $region2: #{tpu_custom_call.1} parent=1 // pred_check
      _
    $region3: #{tpu_custom_call.1} parent=1 // pred_check_branch
      %19 = sbr.rel (0) target = $region5
    $region4: #{tpu_custom_call.1} parent=1 // pred_region
      _
    $region5: #{tpu_custom_call.1} parent=1 // pred_fallthru
      _
    // Predicated region
    $region6: #{tpu_custom_call.1} parent=1 // pred_check
      _
    $region7: #{tpu_custom_call.1} parent=1 // pred_check_branch
      %21 = sbr.rel (0) target = $region9
    $region8: #{tpu_custom_call.1} parent=1 // pred_region
      _
    $region9: #{tpu_custom_call.1} parent=1 // pred_fallthru
      _
    // Predicated region
    $region10: #{tpu_custom_call.1} parent=1 // pred_check
      _
    $region11: #{tpu_custom_call.1} parent=1 // pred_check_branch
      %23 = sbr.rel (0) target = $region13
    $region12: #{tpu_custom_call.1} parent=1 // pred_region
      _
    $region13: #{tpu_custom_call.1} parent=1 // pred_fallthru
      _
    // Predicated region
    $region14: #{tpu_custom_call.1} parent=1 // pred_check
      _
    $region15: #{tpu_custom_call.1} parent=1 // pred_check_branch
      %25 = sbr.rel (0) target = $region17
    $region16: #{tpu_custom_call.1} parent=1 // pred_region
      _
    $region17: #{tpu_custom_call.1} parent=1 // pred_fallthru
      _
    // Predicated region
    $region18: #{tpu_custom_call.1} parent=1 // pred_check
      _
    $region19: #{tpu_custom_call.1} parent=1 // pred_check_branch
      %27 = sbr.rel (0) target = $region21
    $region20: #{tpu_custom_call.1} parent=1 // pred_region
      _
    $region21: #{tpu_custom_call.1} parent=1 // pred_fallthru
      _
    // Predicated region
    $region22: #{tpu_custom_call.1} parent=1 // pred_check
      _
    $region23: #{tpu_custom_call.1} parent=1 // pred_check_branch
      %29 = sbr.rel (0) target = $region25
    $region24: #{tpu_custom_call.1} parent=1 // pred_region
      %s31 = ssub.s32 7808, 7808
      %32 = vsyncadd [#allocation3], %s31
      %s33 = sshll.u32 [#allocation2], 4
      %s34 = int_to_ptr.vmem [resolvable:$true] %s33
      %39 = dma.hbm_to_vmem [thread:$0]  %s5, 7808, %s34, [#allocation3], 64, 64, 4
    $region25: #{tpu_custom_call.1} parent=1 // pred_fallthru
      _
    // Predicated region
    $region26: #{tpu_custom_call.1} parent=1 // pred_check
      _
    $region27: #{tpu_custom_call.1} parent=1 // pred_check_branch
      %41 = sbr.rel (0) target = $region29
    $region28: #{tpu_custom_call.1} parent=1 // pred_region
      %s43 = ssub.s32 3072, 3072
      %44 = vsyncadd [#allocation6], %s43
      %s45 = sshll.u32 [#allocation5], 4
      %s46 = int_to_ptr.vmem [resolvable:$true] %s45
      %51 = dma.hbm_to_vmem [thread:$0]  %s6, 3072, %s46, [#allocation6], 128, 128, 8
    $region29: #{tpu_custom_call.1} parent=1 // pred_fallthru
      _
    // Predicated region
    $region30: #{tpu_custom_call.1} parent=1 // pred_check
      _
    $region31: #{tpu_custom_call.1} parent=1 // pred_check_branch
      %53 = sbr.rel (0) target = $region33
    $region32: #{tpu_custom_call.1} parent=1 // pred_region
      %54 = dma.done [#allocation3], 7808
    $region33: #{tpu_custom_call.1} parent=1 // pred_fallthru
      _
    // Predicated region
    $region34: #{tpu_custom_call.1} parent=1 // pred_check
      _
    $region35: #{tpu_custom_call.1} parent=1 // pred_check_branch
      %56 = sbr.rel (0) target = $region37
    $region36: #{tpu_custom_call.1} parent=1 // pred_region
      %57 = dma.done [#allocation6], 3072
    $region37: #{tpu_custom_call.1} parent=1 // pred_fallthru
      _
    %v59 = vld [vmem:[%s2] sm:$0xf]
    %v60 = vld [vmem:[%s2 + $0x4] sm:$0xf]
    %v61 = vld [vmem:[%s2 + $0x8] sm:$0xf]
    %v62 = vld [vmem:[%s2 + $0xc] sm:$0xf]
    %v63 = vld [vmem:[%s3] sm:$0xf]
    %v64 = vld [vmem:[%s3 + $0x4] sm:$0xf]
    %v65 = vld [vmem:[%s4] sm:$0xf]
    %v66 = vld [vmem:[%s4 + $0x4] sm:$0xf]
    %v67 = vld [vmem:[%s0] sm:$0xf]
    %v68 = vld [vmem:[%s0 + $0x4] sm:$0xf]
    %v69 = vld [vmem:[%s1] sm:$0xf]
    %v70 = vld [vmem:[%s1 + $0x4] sm:$0xf]
    %v71 = vld [vmem:[%s1 + $0x8] sm:$0xf]
    %v72 = vld [vmem:[%s1 + $0xc] sm:$0xf]
    %v73 = vld [vmem:[#allocation2 + $0x18] sm:$0xf]
    %v74 = vld [vmem:[#allocation2 + $0x1c] sm:$0xf]
    %v75 = vld [vmem:[#allocation2 + $0x20] sm:$0xf]
    %v76 = vld [vmem:[#allocation2 + $0x24] sm:$0xf]
    %v77 = vld [vmem:[#allocation2] sm:$0xf]
    %v78 = vld [vmem:[#allocation2 + $0x4] sm:$0xf]
    %v83 = vunpack.c.l.b16 %v59
    %v84 = vunpack.c.l.b16 %v60
    %v85 = vunpack.c.l.b16 %v61
    %v86 = vunpack.c.l.b16 %v62
    %v87 = vpack.c.b16 %v84, %v83
    %v88 = vpack.c.b16 %v86, %v85
    %v91 = vunpack.c.l.b16 %v67
    %v92 = vunpack.c.l.b16 %v68
    %v93 = vpack.c.b16 %v92, %v91
    %vm95 = vcmask 130048
    %v97 = vsel %vm95, %v87, 0
    %v100 = vsel %vm95, %v88, 0
    %102 = vmatprep.subr.bf16.mxu0 0
    %103 = vmatpush1.bf16.msra.mxu0 0
    %104 = vmatprep.subr.bf16.mxu0 0
    %105 = vmatpush1.bf16.msra.mxu0 0
    %106 = vmatprep.subr.bf16.mxu0 0
    %107 = vmatpush1.bf16.msra.mxu0 0
    %108 = vmatprep.subr.bf16.mxu0 0
    %109 = vmatpush1.bf16.msra.mxu0 0
    %110 = vmatprep.subr.bf16.mxu0 0
    %111 = vmatpush1.bf16.msra.mxu0 0
    %112 = vmatprep.subr.bf16.mxu0 0
    %113 = vmatpush1.bf16.msra.mxu0 0
    %114 = vmatprep.subr.bf16.mxu0 0
    %115 = vmatpush1.bf16.msra.mxu0 0
    %116 = vmatprep.subr.bf16.mxu0 0
    %117 = vmatpush1.bf16.msra.mxu0 %v93
    %118 = vmatprep.subr.bf16.mxu0 0
    %119 = vmatpush2.bf16.msra.mxu0 0
    %120 = vmatprep.subr.bf16.mxu0 0
    %121 = vmatpush2.bf16.msra.mxu0 0
    %122 = vmatprep.subr.bf16.mxu0 0
    %123 = vmatpush2.bf16.msra.mxu0 0
    %124 = vmatprep.subr.bf16.mxu0 0
    %125 = vmatpush2.bf16.msra.mxu0 0
    %126 = vmatprep.subr.bf16.mxu0 0
    %127 = vmatpush2.bf16.msra.mxu0 0
    %128 = vmatprep.subr.bf16.mxu0 0
    %129 = vmatpush2.bf16.msra.mxu0 0
    %130 = vmatprep.subr.bf16.mxu0 0
    %131 = vmatpush2.bf16.msra.mxu0 0
    %132 = vmatprep.subr.bf16.mxu0 0
    %133 = vmatpush2.bf16.msra.mxu0 0
    %134 = vmatprep.mubr.bf16.mxu0 0
    %135 = vmatmul.mubr.bf16.gmra.mxu0 %v97
    %v136 = vpop.f32.mrf.mxu0
    %v137 = vadd.f32 0.0, %v136
    %v138 = vpop.f32.mrf.mxu0
    %v139 = vpop.f32.mrf.mxu0
    %v140 = vadd.f32 0.0, %v139
    %v141 = vpop.f32.mrf.mxu0
    %142 = vmatprep.mubr.bf16.mxu0 0
    %143 = vmatmul.mubr.bf16.gmra.mxu0 %v100
    %v144 = vpop.f32.mrf.mxu0
    %v145 = vadd.f32 0.0, %v144
    %v146 = vpop.f32.mrf.mxu0
    %v147 = vpop.f32.mrf.mxu0
    %v148 = vadd.f32 0.0, %v147
    %v149 = vpop.f32.mrf.mxu0
    %150 = vdwg.mxu0
    %v151 = vpack.c.bf16 %v140, %v137
    %v152 = vpack.c.bf16 %v148, %v145
    %v155 = vunpack.c.l.b16 %v77
    %v156 = vunpack.c.l.b16 %v78
    %v157 = vpack.c.b16 %v156, %v155
    %v160 = vsel %vm95, %v151, 0
    %v163 = vsel %vm95, %v152, 0
    %165 = vmatprep.subr.bf16.mxu0 0
    %166 = vmatpush1.bf16.msra.mxu0 0
    %167 = vmatprep.subr.bf16.mxu0 0
    %168 = vmatpush1.bf16.msra.mxu0 0
    %169 = vmatprep.subr.bf16.mxu0 0
    %170 = vmatpush1.bf16.msra.mxu0 0
    %171 = vmatprep.subr.bf16.mxu0 0
    %172 = vmatpush1.bf16.msra.mxu0 0
    %173 = vmatprep.subr.bf16.mxu0 0
    %174 = vmatpush1.bf16.msra.mxu0 0
    %175 = vmatprep.subr.bf16.mxu0 0
    %176 = vmatpush1.bf16.msra.mxu0 0
    %177 = vmatprep.subr.bf16.mxu0 0
    %178 = vmatpush1.bf16.msra.mxu0 0
    %179 = vmatprep.subr.bf16.mxu0 0
    %180 = vmatpush1.bf16.msra.mxu0 %v157
    %181 = vmatprep.subr.bf16.mxu0 0
    %182 = vmatpush2.bf16.msra.mxu0 0
    %183 = vmatprep.subr.bf16.mxu0 0
    %184 = vmatpush2.bf16.msra.mxu0 0
    %185 = vmatprep.subr.bf16.mxu0 0
    %186 = vmatpush2.bf16.msra.mxu0 0
    %187 = vmatprep.subr.bf16.mxu0 0
    %188 = vmatpush2.bf16.msra.mxu0 0
    %189 = vmatprep.subr.bf16.mxu0 0
    %190 = vmatpush2.bf16.msra.mxu0 0
    %191 = vmatprep.subr.bf16.mxu0 0
    %192 = vmatpush2.bf16.msra.mxu0 0
    %193 = vmatprep.subr.bf16.mxu0 0
    %194 = vmatpush2.bf16.msra.mxu0 0
    %195 = vmatprep.subr.bf16.mxu0 0
    %196 = vmatpush2.bf16.msra.mxu0 0
    %197 = vmatprep.mubr.bf16.mxu0 0
    %198 = vmatmul.mubr.bf16.gmra.mxu0 %v160
    %v199 = vpop.f32.mrf.mxu0
    %v200 = vadd.f32 0.0, %v199
    %v201 = vpop.f32.mrf.mxu0
    %v202 = vpop.f32.mrf.mxu0
    %v203 = vadd.f32 0.0, %v202
    %v204 = vpop.f32.mrf.mxu0
    %205 = vmatprep.mubr.bf16.mxu0 0
    %206 = vmatmul.mubr.bf16.gmra.mxu0 %v163
    %v207 = vpop.f32.mrf.mxu0
    %v208 = vadd.f32 0.0, %v207
    %v209 = vpop.f32.mrf.mxu0
    %v210 = vpop.f32.mrf.mxu0
    %v211 = vadd.f32 0.0, %v210
    %v212 = vpop.f32.mrf.mxu0
    %213 = vdwg.mxu0
    %v214 = vld [vmem:[#allocation5] sm:$0xff]
    %v215 = vld [vmem:[#allocation5 + $0x8] sm:$0xff]
    %v216 = vld [vmem:[#allocation5 + $0x10] sm:$0xff]
    %v217 = vld [vmem:[#allocation5 + $0x18] sm:$0xff]
    %v218 = vmul.f32 %v200, %v214
    %v219 = vmul.f32 %v203, %v215
    %v220 = vmul.f32 %v208, %v216
    %v221 = vmul.f32 %v211, %v217
    %v226 = vunpack.c.l.b16 %v69
    %v227 = vunpack.c.l.b16 %v70
    %v228 = vunpack.c.l.b16 %v71
    %v229 = vunpack.c.l.b16 %v72
    %v230 = vpack.c.b16 %v227, %v226
    %v231 = vpack.c.b16 %v229, %v228
    %v234 = vunpack.c.l.b16 %v75
    %v235 = vunpack.c.l.b16 %v76
    %v236 = vpack.c.b16 %v235, %v234
    %v239 = vsel %vm95, %v230, 0
    %v242 = vsel %vm95, %v231, 0
    %244 = vmatprep.subr.bf16.mxu0 0
    %245 = vmatpush1.bf16.msra.mxu0 0
    %246 = vmatprep.subr.bf16.mxu0 0
    %247 = vmatpush1.bf16.msra.mxu0 0
    %248 = vmatprep.subr.bf16.mxu0 0
    %249 = vmatpush1.bf16.msra.mxu0 0
    %250 = vmatprep.subr.bf16.mxu0 0
    %251 = vmatpush1.bf16.msra.mxu0 0
    %252 = vmatprep.subr.bf16.mxu0 0
    %253 = vmatpush1.bf16.msra.mxu0 0
    %254 = vmatprep.subr.bf16.mxu0 0
    %255 = vmatpush1.bf16.msra.mxu0 0
    %256 = vmatprep.subr.bf16.mxu0 0
    %257 = vmatpush1.bf16.msra.mxu0 0
    %258 = vmatprep.subr.bf16.mxu0 0
    %259 = vmatpush1.bf16.msra.mxu0 %v236
    %260 = vmatprep.subr.bf16.mxu0 0
    %261 = vmatpush2.bf16.msra.mxu0 0
    %262 = vmatprep.subr.bf16.mxu0 0
    %263 = vmatpush2.bf16.msra.mxu0 0
    %264 = vmatprep.subr.bf16.mxu0 0
    %265 = vmatpush2.bf16.msra.mxu0 0
    %266 = vmatprep.subr.bf16.mxu0 0
    %267 = vmatpush2.bf16.msra.mxu0 0
    %268 = vmatprep.subr.bf16.mxu0 0
    %269 = vmatpush2.bf16.msra.mxu0 0
    %270 = vmatprep.subr.bf16.mxu0 0
    %271 = vmatpush2.bf16.msra.mxu0 0
    %272 = vmatprep.subr.bf16.mxu0 0
    %273 = vmatpush2.bf16.msra.mxu0 0
    %274 = vmatprep.subr.bf16.mxu0 0
    %275 = vmatpush2.bf16.msra.mxu0 0
    %276 = vmatprep.mubr.bf16.mxu0 0
    %277 = vmatmul.mubr.bf16.gmra.mxu0 %v239
    %v278 = vpop.f32.mrf.mxu0
    %v279 = vadd.f32 %v218, %v278
    %v280 = vpop.f32.mrf.mxu0
    %v281 = vpop.f32.mrf.mxu0
    %v282 = vadd.f32 %v219, %v281
    %v283 = vpop.f32.mrf.mxu0
    %284 = vmatprep.mubr.bf16.mxu0 0
    %285 = vmatmul.mubr.bf16.gmra.mxu0 %v242
    %v286 = vpop.f32.mrf.mxu0
    %v287 = vadd.f32 %v220, %v286
    %v288 = vpop.f32.mrf.mxu0
    %v289 = vpop.f32.mrf.mxu0
    %v290 = vadd.f32 %v221, %v289
    %v291 = vpop.f32.mrf.mxu0
    %292 = vdwg.mxu0
    %v293 = vld [vmem:[#allocation2 + $0x8] sm:$0xf]
    %v294 = vld [vmem:[#allocation2 + $0xc] sm:$0xf]
    %v297 = vunpack.c.l.b16 %v63
    %v298 = vunpack.c.l.b16 %v64
    %v299 = vpack.c.b16 %v298, %v297
    %vm302 = vcmask 261120
    %v304 = vsel %vm302, %v299, 0
    %306 = vmatprep.subr.bf16.mxu0 0
    %307 = vmatpush1.bf16.msra.mxu0 0
    %308 = vmatprep.subr.bf16.mxu0 0
    %309 = vmatpush1.bf16.msra.mxu0 0
    %310 = vmatprep.subr.bf16.mxu0 0
    %311 = vmatpush1.bf16.msra.mxu0 0
    %312 = vmatprep.subr.bf16.mxu0 0
    %313 = vmatpush1.bf16.msra.mxu0 0
    %314 = vmatprep.subr.bf16.mxu0 0
    %315 = vmatpush1.bf16.msra.mxu0 0
    %316 = vmatprep.subr.bf16.mxu0 0
    %317 = vmatpush1.bf16.msra.mxu0 0
    %318 = vmatprep.subr.bf16.mxu0 0
    %319 = vmatpush1.bf16.msra.mxu0 %v231
    %320 = vmatprep.subr.bf16.mxu0 0
    %321 = vmatpush1.bf16.msra.mxu0 %v230
    %322 = vmatprep.subr.bf16.mxu0 0
    %323 = vmatpush2.bf16.msra.mxu0 0
    %324 = vmatprep.subr.bf16.mxu0 0
    %325 = vmatpush2.bf16.msra.mxu0 0
    %326 = vmatprep.subr.bf16.mxu0 0
    %327 = vmatpush2.bf16.msra.mxu0 0
    %328 = vmatprep.subr.bf16.mxu0 0
    %329 = vmatpush2.bf16.msra.mxu0 0
    %330 = vmatprep.subr.bf16.mxu0 0
    %331 = vmatpush2.bf16.msra.mxu0 0
    %332 = vmatprep.subr.bf16.mxu0 0
    %333 = vmatpush2.bf16.msra.mxu0 0
    %334 = vmatprep.subr.bf16.mxu0 0
    %335 = vmatpush2.bf16.msra.mxu0 0
    %336 = vmatprep.subr.bf16.mxu0 0
    %337 = vmatpush2.bf16.msra.mxu0 0
    %338 = vmatprep.mubr.bf16.mxu0 0
    %339 = vmatmul.mubr.bf16.gmra.mxu0 %v304
    %v340 = vpop.f32.mrf.mxu0
    %v341 = vadd.f32 0.0, %v340
    %v342 = vpop.f32.mrf.mxu0
    %v343 = vpop.f32.mrf.mxu0
    %v344 = vadd.f32 0.0, %v343
    %v345 = vpop.f32.mrf.mxu0
    %346 = vdwg.mxu0
    %v347 = vpack.c.bf16 %v344, %v341
    %v350 = vunpack.c.l.b16 %v293
    %v351 = vunpack.c.l.b16 %v294
    %v352 = vpack.c.b16 %v351, %v350
    %v355 = vsel %vm95, %v347, 0
    %357 = vmatprep.subr.bf16.mxu0 0
    %358 = vmatpush1.bf16.msra.mxu0 0
    %359 = vmatprep.subr.bf16.mxu0 0
    %360 = vmatpush1.bf16.msra.mxu0 0
    %361 = vmatprep.subr.bf16.mxu0 0
    %362 = vmatpush1.bf16.msra.mxu0 0
    %363 = vmatprep.subr.bf16.mxu0 0
    %364 = vmatpush1.bf16.msra.mxu0 0
    %365 = vmatprep.subr.bf16.mxu0 0
    %366 = vmatpush1.bf16.msra.mxu0 0
    %367 = vmatprep.subr.bf16.mxu0 0
    %368 = vmatpush1.bf16.msra.mxu0 0
    %369 = vmatprep.subr.bf16.mxu0 0
    %370 = vmatpush1.bf16.msra.mxu0 0
    %371 = vmatprep.subr.bf16.mxu0 0
    %372 = vmatpush1.bf16.msra.mxu0 %v352
    %373 = vmatprep.subr.bf16.mxu0 0
    %374 = vmatpush2.bf16.msra.mxu0 0
    %375 = vmatprep.subr.bf16.mxu0 0
    %376 = vmatpush2.bf16.msra.mxu0 0
    %377 = vmatprep.subr.bf16.mxu0 0
    %378 = vmatpush2.bf16.msra.mxu0 0
    %379 = vmatprep.subr.bf16.mxu0 0
    %380 = vmatpush2.bf16.msra.mxu0 0
    %381 = vmatprep.subr.bf16.mxu0 0
    %382 = vmatpush2.bf16.msra.mxu0 0
    %383 = vmatprep.subr.bf16.mxu0 0
    %384 = vmatpush2.bf16.msra.mxu0 0
    %385 = vmatprep.subr.bf16.mxu0 0
    %386 = vmatpush2.bf16.msra.mxu0 0
    %387 = vmatprep.subr.bf16.mxu0 0
    %388 = vmatpush2.bf16.msra.mxu0 0
    %389 = vmatprep.mubr.bf16.mxu0 0
    %390 = vmatmul.mubr.bf16.gmra.mxu0 %v355
    %v391 = vpop.f32.mrf.mxu0
    %v392 = vadd.f32 0.0, %v391
    %v393 = vpop.f32.mrf.mxu0
    %v394 = vpop.f32.mrf.mxu0
    %v395 = vadd.f32 0.0, %v394
    %v396 = vpop.f32.mrf.mxu0
    %397 = vdwg.mxu0
    %v398 = vld [vmem:[#allocation5 + $0x20] sm:$0xff]
    %v399 = vld [vmem:[#allocation5 + $0x28] sm:$0xff]
    %v400 = vmul.f32 %v392, %v398
    %v401 = vmul.f32 %v395, %v399
    %v404 = vunpack.c.l.b16 %v73
    %v405 = vunpack.c.l.b16 %v74
    %v406 = vpack.c.b16 %v405, %v404
    %v409 = vsel %vm95, %v93, 0
    %411 = vmatprep.subr.bf16.mxu0 0
    %412 = vmatpush1.bf16.msra.mxu0 0
    %413 = vmatprep.subr.bf16.mxu0 0
    %414 = vmatpush1.bf16.msra.mxu0 0
    %415 = vmatprep.subr.bf16.mxu0 0
    %416 = vmatpush1.bf16.msra.mxu0 0
    %417 = vmatprep.subr.bf16.mxu0 0
    %418 = vmatpush1.bf16.msra.mxu0 0
    %419 = vmatprep.subr.bf16.mxu0 0
    %420 = vmatpush1.bf16.msra.mxu0 0
    %421 = vmatprep.subr.bf16.mxu0 0
    %422 = vmatpush1.bf16.msra.mxu0 0
    %423 = vmatprep.subr.bf16.mxu0 0
    %424 = vmatpush1.bf16.msra.mxu0 0
    %425 = vmatprep.subr.bf16.mxu0 0
    %426 = vmatpush1.bf16.msra.mxu0 %v406
    %427 = vmatprep.subr.bf16.mxu0 0
    %428 = vmatpush2.bf16.msra.mxu0 0
    %429 = vmatprep.subr.bf16.mxu0 0
    %430 = vmatpush2.bf16.msra.mxu0 0
    %431 = vmatprep.subr.bf16.mxu0 0
    %432 = vmatpush2.bf16.msra.mxu0 0
    %433 = vmatprep.subr.bf16.mxu0 0
    %434 = vmatpush2.bf16.msra.mxu0 0
    %435 = vmatprep.subr.bf16.mxu0 0
    %436 = vmatpush2.bf16.msra.mxu0 0
    %437 = vmatprep.subr.bf16.mxu0 0
    %438 = vmatpush2.bf16.msra.mxu0 0
    %439 = vmatprep.subr.bf16.mxu0 0
    %440 = vmatpush2.bf16.msra.mxu0 0
    %441 = vmatprep.subr.bf16.mxu0 0
    %442 = vmatpush2.bf16.msra.mxu0 0
    %443 = vmatprep.mubr.bf16.mxu0 0
    %444 = vmatmul.mubr.bf16.gmra.mxu0 %v409
    %v445 = vpop.f32.mrf.mxu0
    %v446 = vadd.f32 %v400, %v445
    %v447 = vpop.f32.mrf.mxu0
    %v448 = vpop.f32.mrf.mxu0
    %v449 = vadd.f32 %v401, %v448
    %v450 = vpop.f32.mrf.mxu0
    %451 = vdwg.mxu0
    %v452 = vld [vmem:[#allocation2 + $0x10] sm:$0xf]
    %v453 = vld [vmem:[#allocation2 + $0x14] sm:$0xf]
    %v456 = vunpack.c.l.b16 %v65
    %v457 = vunpack.c.l.b16 %v66
    %v458 = vpack.c.b16 %v457, %v456
    %v460 = vsel %vm95, %v458, 0
    %462 = vmatprep.subr.bf16.mxu0 0
    %463 = vmatpush1.bf16.msra.mxu0 0
    %464 = vmatprep.subr.bf16.mxu0 0
    %465 = vmatpush1.bf16.msra.mxu0 0
    %466 = vmatprep.subr.bf16.mxu0 0
    %467 = vmatpush1.bf16.msra.mxu0 0
    %468 = vmatprep.subr.bf16.mxu0 0
    %469 = vmatpush1.bf16.msra.mxu0 0
    %470 = vmatprep.subr.bf16.mxu0 0
    %471 = vmatpush1.bf16.msra.mxu0 0
    %472 = vmatprep.subr.bf16.mxu0 0
    %473 = vmatpush1.bf16.msra.mxu0 0
    %474 = vmatprep.subr.bf16.mxu0 0
    %475 = vmatpush1.bf16.msra.mxu0 0
    %476 = vmatprep.subr.bf16.mxu0 0
    %477 = vmatpush1.bf16.msra.mxu0 %v93
    %478 = vmatprep.subr.bf16.mxu0 0
    %479 = vmatpush2.bf16.msra.mxu0 0
    %480 = vmatprep.subr.bf16.mxu0 0
    %481 = vmatpush2.bf16.msra.mxu0 0
    %482 = vmatprep.subr.bf16.mxu0 0
    %483 = vmatpush2.bf16.msra.mxu0 0
    %484 = vmatprep.subr.bf16.mxu0 0
    %485 = vmatpush2.bf16.msra.mxu0 0
    %486 = vmatprep.subr.bf16.mxu0 0
    %487 = vmatpush2.bf16.msra.mxu0 0
    %488 = vmatprep.subr.bf16.mxu0 0
    %489 = vmatpush2.bf16.msra.mxu0 0
    %490 = vmatprep.subr.bf16.mxu0 0
    %491 = vmatpush2.bf16.msra.mxu0 0
    %492 = vmatprep.subr.bf16.mxu0 0
    %493 = vmatpush2.bf16.msra.mxu0 0
    %494 = vmatprep.mubr.bf16.mxu0 0
    %495 = vmatmul.mubr.bf16.gmra.mxu0 %v460
    %v496 = vpop.f32.mrf.mxu0
    %v497 = vadd.f32 0.0, %v496
    %v498 = vpop.f32.mrf.mxu0
    %v499 = vpop.f32.mrf.mxu0
    %v500 = vadd.f32 0.0, %v499
    %v501 = vpop.f32.mrf.mxu0
    %502 = vdwg.mxu0
    %v503 = vpack.c.bf16 %v500, %v497
    %v506 = vunpack.c.l.b16 %v452
    %v507 = vunpack.c.l.b16 %v453
    %v508 = vpack.c.b16 %v507, %v506
    %v511 = vsel %vm95, %v503, 0
    %513 = vmatprep.subr.bf16.mxu0 0
    %514 = vmatpush1.bf16.msra.mxu0 0
    %515 = vmatprep.subr.bf16.mxu0 0
    %516 = vmatpush1.bf16.msra.mxu0 0
    %517 = vmatprep.subr.bf16.mxu0 0
    %518 = vmatpush1.bf16.msra.mxu0 0
    %519 = vmatprep.subr.bf16.mxu0 0
    %520 = vmatpush1.bf16.msra.mxu0 0
    %521 = vmatprep.subr.bf16.mxu0 0
    %522 = vmatpush1.bf16.msra.mxu0 0
    %523 = vmatprep.subr.bf16.mxu0 0
    %524 = vmatpush1.bf16.msra.mxu0 0
    %525 = vmatprep.subr.bf16.mxu0 0
    %526 = vmatpush1.bf16.msra.mxu0 0
    %527 = vmatprep.subr.bf16.mxu0 0
    %528 = vmatpush1.bf16.msra.mxu0 %v508
    %529 = vmatprep.subr.bf16.mxu0 0
    %530 = vmatpush2.bf16.msra.mxu0 0
    %531 = vmatprep.subr.bf16.mxu0 0
    %532 = vmatpush2.bf16.msra.mxu0 0
    %533 = vmatprep.subr.bf16.mxu0 0
    %534 = vmatpush2.bf16.msra.mxu0 0
    %535 = vmatprep.subr.bf16.mxu0 0
    %536 = vmatpush2.bf16.msra.mxu0 0
    %537 = vmatprep.subr.bf16.mxu0 0
    %538 = vmatpush2.bf16.msra.mxu0 0
    %539 = vmatprep.subr.bf16.mxu0 0
    %540 = vmatpush2.bf16.msra.mxu0 0
    %541 = vmatprep.subr.bf16.mxu0 0
    %542 = vmatpush2.bf16.msra.mxu0 0
    %543 = vmatprep.subr.bf16.mxu0 0
    %544 = vmatpush2.bf16.msra.mxu0 0
    %545 = vmatprep.mubr.bf16.mxu0 0
    %546 = vmatmul.mubr.bf16.gmra.mxu0 %v511
    %v547 = vpop.f32.mrf.mxu0
    %v548 = vadd.f32 0.0, %v547
    %v549 = vpop.f32.mrf.mxu0
    %v550 = vpop.f32.mrf.mxu0
    %v551 = vadd.f32 0.0, %v550
    %v552 = vpop.f32.mrf.mxu0
    %553 = vdwg.mxu0
    %v554 = vld [vmem:[#allocation5 + $0x30] sm:$0xff]
    %v555 = vld [vmem:[#allocation5 + $0x38] sm:$0xff]
    %v556 = vmul.f32 %v548, %v554
    %v557 = vmul.f32 %v551, %v555
    %v558 = vadd.f32 %v446, %v556
    %v559 = vadd.f32 %v449, %v557
    %v560 = vadd.f32 %v558, %v559
    %v561 = vrot.slane %v560, 4
    %v562 = vadd.f32 %v560, %v561
    %v563 = vrot.slane %v562, 2
    %v564 = vadd.f32 %v562, %v563
    %v565 = vrot.slane %v564, 1
    %v566 = vadd.f32 %v564, %v565
    %v567 = vmul.f32 %v566, 0.0625
    %v568 = vmul.f32 %v558, %v558
    %v569 = vmul.f32 %v559, %v559
    %v570 = vadd.f32 %v568, %v569
    %v571 = vrot.slane %v570, 4
    %v572 = vadd.f32 %v570, %v571
    %v573 = vrot.slane %v572, 2
    %v574 = vadd.f32 %v572, %v573
    %v575 = vrot.slane %v574, 1
    %v576 = vadd.f32 %v574, %v575
    %v577 = vmul.f32 %v576, 0.0625
    %v578 = vmul.f32 %v567, %v567
    %v579 = vsub.f32 %v577, %v578
    %v580 = vsub.f32 %v558, %v567
    %v581 = vsub.f32 %v559, %v567
    %v582 = vadd.f32 %v579, 1.0
    %v583 = vrsqrt.pop %v582
    %v584 = vmul.f32 %v580, %v583
    %v585 = vmul.f32 %v581, %v583
    %v586 = vld [vmem:[#allocation5 + $0x40] sm:$0x1]
    %v587 = vlaneseq
    %v588 = vshrl.u32 %v587, 7
    %v589 = vsub.s32 0, %v588
    %v590 = vrot.slane %v586, %v589
    %v591 = vmul.f32 %v584, %v590
    %v592 = vmul.f32 %v585, %v590
    %v593 = vld [vmem:[#allocation5 + $0x48] sm:$0x1]
    %v594 = vlaneseq
    %v595 = vshrl.u32 %v594, 7
    %v596 = vsub.s32 0, %v595
    %v597 = vrot.slane %v593, %v596
    %v598 = vadd.f32 %v591, %v597
    %v599 = vadd.f32 %v592, %v597
    %vm600 = vcmp.ge.f32.partialorder %v598, 0.0
    %vm601 = vcmp.ge.f32.partialorder %v599, 0.0
    %v602 = vmul.f32 %v598, 0.01
    %v603 = vmul.f32 %v599, 0.01
    %v604 = vsel %vm600, %v598, %v602
    %v605 = vsel %vm601, %v599, %v603
    %v606 = vld [vmem:[#allocation5 + $0x80] sm:$0xff]
    %v607 = vld [vmem:[#allocation5 + $0x88] sm:$0xff]
    %v608 = vmul.f32 %v604, %v606
    %v609 = vmul.f32 %v605, %v607
    %v610 = vpack.c.bf16 %v609, %v608
    %v611 = vadd.f32 %v279, %v282
    %v612 = vadd.f32 %v611, %v287
    %v613 = vadd.f32 %v612, %v290
    %v614 = vrot.slane %v613, 4
    %v615 = vadd.f32 %v613, %v614
    %v616 = vrot.slane %v615, 2
    %v617 = vadd.f32 %v615, %v616
    %v618 = vrot.slane %v617, 1
    %v619 = vadd.f32 %v617, %v618
    %v620 = vmul.f32 %v619, 0.041666668
    %v621 = vmul.f32 %v279, %v279
    %v622 = vmul.f32 %v282, %v282
    %v623 = vmul.f32 %v287, %v287
    %v624 = vmul.f32 %v290, %v290
    %v625 = vadd.f32 %v621, %v622
    %v626 = vadd.f32 %v625, %v623
    %v627 = vadd.f32 %v626, %v624
    %v628 = vrot.slane %v627, 4
    %v629 = vadd.f32 %v627, %v628
    %v630 = vrot.slane %v629, 2
    %v631 = vadd.f32 %v629, %v630
    %v632 = vrot.slane %v631, 1
    %v633 = vadd.f32 %v631, %v632
    %v634 = vmul.f32 %v633, 0.041666668
    %v635 = vmul.f32 %v620, %v620
    %v636 = vsub.f32 %v634, %v635
    %v637 = vsub.f32 %v279, %v620
    %v638 = vsub.f32 %v282, %v620
    %v639 = vsub.f32 %v287, %v620
    %v640 = vsub.f32 %v290, %v620
    %v641 = vadd.f32 %v636, 1.0
    %v642 = vrsqrt.pop %v641
    %v643 = vmul.f32 %v637, %v642
    %v644 = vmul.f32 %v638, %v642
    %v645 = vmul.f32 %v639, %v642
    %v646 = vmul.f32 %v640, %v642
    %v647 = vld [vmem:[#allocation5 + $0x50] sm:$0x1]
    %v648 = vlaneseq
    %v649 = vshrl.u32 %v648, 7
    %v650 = vsub.s32 0, %v649
    %v651 = vrot.slane %v647, %v650
    %v652 = vmul.f32 %v643, %v651
    %v653 = vmul.f32 %v644, %v651
    %v654 = vmul.f32 %v645, %v651
    %v655 = vmul.f32 %v646, %v651
    %v656 = vld [vmem:[#allocation5 + $0x58] sm:$0x1]
    %v657 = vlaneseq
    %v658 = vshrl.u32 %v657, 7
    %v659 = vsub.s32 0, %v658
    %v660 = vrot.slane %v656, %v659
    %v661 = vadd.f32 %v652, %v660
    %v662 = vadd.f32 %v653, %v660
    %v663 = vadd.f32 %v654, %v660
    %v664 = vadd.f32 %v655, %v660
    %vm665 = vcmp.ge.f32.partialorder %v661, 0.0
    %vm666 = vcmp.ge.f32.partialorder %v662, 0.0
    %vm667 = vcmp.ge.f32.partialorder %v663, 0.0
    %vm668 = vcmp.ge.f32.partialorder %v664, 0.0
    %v669 = vmul.f32 %v661, 0.01
    %v670 = vmul.f32 %v662, 0.01
    %v671 = vmul.f32 %v663, 0.01
    %v672 = vmul.f32 %v664, 0.01
    %v673 = vsel %vm665, %v661, %v669
    %v674 = vsel %vm666, %v662, %v670
    %v675 = vsel %vm667, %v663, %v671
    %v676 = vsel %vm668, %v664, %v672
    %v677 = vld [vmem:[#allocation5 + $0x90] sm:$0xff]
    %v678 = vld [vmem:[#allocation5 + $0x98] sm:$0xff]
    %v679 = vld [vmem:[#allocation5 + $0xa0] sm:$0xff]
    %v680 = vld [vmem:[#allocation5 + $0xa8] sm:$0xff]
    %v681 = vmul.f32 %v673, %v677
    %v682 = vmul.f32 %v674, %v678
    %v683 = vmul.f32 %v675, %v679
    %v684 = vmul.f32 %v676, %v680
    %v685 = vpack.c.bf16 %v682, %v681
    %v686 = vpack.c.bf16 %v684, %v683
    %v687 = vld [vmem:[#allocation2 + $0xe8] sm:$0xf]
    %v688 = vld [vmem:[#allocation2 + $0xec] sm:$0xf]
    %v689 = vld [vmem:[#allocation2 + $0xf0] sm:$0xf]
    %v690 = vld [vmem:[#allocation2 + $0xf4] sm:$0xf]
    %v691 = vld [vmem:[#allocation2 + $0xf8] sm:$0xf]
    %v692 = vld [vmem:[#allocation2 + $0xfc] sm:$0xf]
    %v693 = vld [vmem:[#allocation2 + $0x100] sm:$0xf]
    %v694 = vld [vmem:[#allocation2 + $0x104] sm:$0xf]
    %v695 = vld [vmem:[#allocation2 + $0x108] sm:$0xf]
    %v696 = vld [vmem:[#allocation2 + $0x10c] sm:$0xf]
    %v697 = vld [vmem:[#allocation2 + $0x110] sm:$0xf]
    %v698 = vld [vmem:[#allocation2 + $0x114] sm:$0xf]
    %v699 = vld [vmem:[#allocation2 + $0x118] sm:$0xf]
    %v700 = vld [vmem:[#allocation2 + $0x11c] sm:$0xf]
    %v701 = vld [vmem:[#allocation2 + $0x120] sm:$0xf]
    %v702 = vld [vmem:[#allocation2 + $0x124] sm:$0xf]
    %v703 = vld [vmem:[#allocation2 + $0x128] sm:$0xf]
    %v704 = vld [vmem:[#allocation2 + $0x12c] sm:$0xf]
    %v705 = vld [vmem:[#allocation2 + $0x130] sm:$0xf]
    %v706 = vld [vmem:[#allocation2 + $0x134] sm:$0xf]
    %v707 = vld [vmem:[#allocation2 + $0x138] sm:$0xf]
    %v708 = vld [vmem:[#allocation2 + $0x13c] sm:$0xf]
    %v709 = vld [vmem:[#allocation2 + $0x140] sm:$0xf]
    %v710 = vld [vmem:[#allocation2 + $0x144] sm:$0xf]
    %v711 = vld [vmem:[#allocation2 + $0x148] sm:$0xf]
    %v712 = vld [vmem:[#allocation2 + $0x14c] sm:$0xf]
    %v713 = vld [vmem:[#allocation2 + $0x150] sm:$0xf]
    %v714 = vld [vmem:[#allocation2 + $0x154] sm:$0xf]
    %v715 = vld [vmem:[#allocation2 + $0x158] sm:$0xf]
    %v716 = vld [vmem:[#allocation2 + $0x15c] sm:$0xf]
    %v717 = vld [vmem:[#allocation2 + $0x160] sm:$0xf]
    %v718 = vld [vmem:[#allocation2 + $0x164] sm:$0xf]
    %v719 = vld [vmem:[#allocation2 + $0x28] sm:$0xf]
    %v720 = vld [vmem:[#allocation2 + $0x2c] sm:$0xf]
    %v721 = vld [vmem:[#allocation2 + $0x30] sm:$0xf]
    %v722 = vld [vmem:[#allocation2 + $0x34] sm:$0xf]
    %v723 = vld [vmem:[#allocation2 + $0x38] sm:$0xf]
    %v724 = vld [vmem:[#allocation2 + $0x3c] sm:$0xf]
    %v725 = vld [vmem:[#allocation2 + $0x40] sm:$0xf]
    %v726 = vld [vmem:[#allocation2 + $0x44] sm:$0xf]
    %v727 = vld [vmem:[#allocation2 + $0x48] sm:$0xf]
    %v728 = vld [vmem:[#allocation2 + $0x4c] sm:$0xf]
    %v729 = vld [vmem:[#allocation2 + $0x50] sm:$0xf]
    %v730 = vld [vmem:[#allocation2 + $0x54] sm:$0xf]
    %v731 = vld [vmem:[#allocation2 + $0x58] sm:$0xf]
    %v732 = vld [vmem:[#allocation2 + $0x5c] sm:$0xf]
    %v733 = vld [vmem:[#allocation2 + $0x60] sm:$0xf]
    %v734 = vld [vmem:[#allocation2 + $0x64] sm:$0xf]
    %v751 = vunpack.c.l.b16 %v719
    %v752 = vunpack.c.l.b16 %v720
    %v753 = vunpack.c.l.b16 %v721
    %v754 = vunpack.c.l.b16 %v722
    %v755 = vunpack.c.l.b16 %v723
    %v756 = vunpack.c.l.b16 %v724
    %v757 = vunpack.c.l.b16 %v725
    %v758 = vunpack.c.l.b16 %v726
    %v759 = vunpack.c.l.b16 %v727
    %v760 = vunpack.c.l.b16 %v728
    %v761 = vunpack.c.l.b16 %v729
    %v762 = vunpack.c.l.b16 %v730
    %v763 = vunpack.c.l.b16 %v731
    %v764 = vunpack.c.l.b16 %v732
    %v765 = vunpack.c.l.b16 %v733
    %v766 = vunpack.c.l.b16 %v734
    %v767 = vpack.c.b16 %v752, %v751
    %v768 = vpack.c.b16 %v754, %v753
    %v769 = vpack.c.b16 %v756, %v755
    %v770 = vpack.c.b16 %v758, %v757
    %v771 = vpack.c.b16 %v760, %v759
    %v772 = vpack.c.b16 %v762, %v761
    %v773 = vpack.c.b16 %v764, %v763
    %v774 = vpack.c.b16 %v766, %v765
    %783 = vmatprep.subr.bf16.mxu0 0
    %784 = vmatpush1.bf16.msra.mxu0 %v774
    %785 = vmatprep.subr.bf16.mxu0 0
    %786 = vmatpush1.bf16.msra.mxu0 %v773
    %787 = vmatprep.subr.bf16.mxu0 0
    %788 = vmatpush1.bf16.msra.mxu0 %v772
    %789 = vmatprep.subr.bf16.mxu0 0
    %790 = vmatpush1.bf16.msra.mxu0 %v771
    %791 = vmatprep.subr.bf16.mxu0 0
    %792 = vmatpush1.bf16.msra.mxu0 %v770
    %793 = vmatprep.subr.bf16.mxu0 0
    %794 = vmatpush1.bf16.msra.mxu0 %v769
    %795 = vmatprep.subr.bf16.mxu0 0
    %796 = vmatpush1.bf16.msra.mxu0 %v768
    %797 = vmatprep.subr.bf16.mxu0 0
    %798 = vmatpush1.bf16.msra.mxu0 %v767
    %799 = vmatprep.subr.bf16.mxu0 0
    %800 = vmatpush2.bf16.msra.mxu0 0
    %801 = vmatprep.subr.bf16.mxu0 0
    %802 = vmatpush2.bf16.msra.mxu0 0
    %803 = vmatprep.subr.bf16.mxu0 0
    %804 = vmatpush2.bf16.msra.mxu0 0
    %805 = vmatprep.subr.bf16.mxu0 0
    %806 = vmatpush2.bf16.msra.mxu0 0
    %807 = vmatprep.subr.bf16.mxu0 0
    %808 = vmatpush2.bf16.msra.mxu0 0
    %809 = vmatprep.subr.bf16.mxu0 0
    %810 = vmatpush2.bf16.msra.mxu0 0
    %811 = vmatprep.subr.bf16.mxu0 0
    %812 = vmatpush2.bf16.msra.mxu0 0
    %813 = vmatprep.subr.bf16.mxu0 0
    %814 = vmatpush2.bf16.msra.mxu0 0
    %815 = vmatprep.mubr.bf16.mxu0 0
    %816 = vmatmul.mubr.bf16.gmra.mxu0 %v610
    %v817 = vpop.f32.mrf.mxu0
    %v818 = vadd.f32 0.0, %v817
    %v819 = vpop.f32.mrf.mxu0
    %v820 = vpop.f32.mrf.mxu0
    %v821 = vadd.f32 0.0, %v820
    %v822 = vpop.f32.mrf.mxu0
    %823 = vdwg.mxu0
    %v824 = vpack.c.bf16 %v821, %v818
    %825 = vmatprep.subr.bf16.mxu0 0
    %826 = vmatpush1.bf16.msra.mxu0 0
    %827 = vmatprep.subr.bf16.mxu0 0
    %828 = vmatpush1.bf16.msra.mxu0 0
    %829 = vmatprep.subr.bf16.mxu0 0
    %830 = vmatpush1.bf16.msra.mxu0 0
    %831 = vmatprep.subr.bf16.mxu0 0
    %832 = vmatpush1.bf16.msra.mxu0 0
    %833 = vmatprep.subr.bf16.mxu0 0
    %834 = vmatpush1.bf16.msra.mxu0 0
    %835 = vmatprep.subr.bf16.mxu0 0
    %836 = vmatpush1.bf16.msra.mxu0 0
    %837 = vmatprep.subr.bf16.mxu0 0
    %838 = vmatpush1.bf16.msra.mxu0 0
    %839 = vmatprep.subr.bf16.mxu0 0
    %840 = vmatpush1.bf16.msra.mxu0 %v824
    %841 = vmatprep.subr.bf16.mxu0 0
    %842 = vmatpush2.bf16.msra.mxu0 0
    %843 = vmatprep.subr.bf16.mxu0 0
    %844 = vmatpush2.bf16.msra.mxu0 0
    %845 = vmatprep.subr.bf16.mxu0 0
    %846 = vmatpush2.bf16.msra.mxu0 0
    %847 = vmatprep.subr.bf16.mxu0 0
    %848 = vmatpush2.bf16.msra.mxu0 0
    %849 = vmatprep.subr.bf16.mxu0 0
    %850 = vmatpush2.bf16.msra.mxu0 0
    %851 = vmatprep.subr.bf16.mxu0 0
    %852 = vmatpush2.bf16.msra.mxu0 0
    %853 = vmatprep.subr.bf16.mxu0 0
    %854 = vmatpush2.bf16.msra.mxu0 0
    %855 = vmatprep.subr.bf16.mxu0 0
    %856 = vmatpush2.bf16.msra.mxu0 0
    %857 = vmatprep.mubr.bf16.mxu0 0
    %858 = vmatmul.mubr.bf16.gmra.mxu0 %v97
    %v859 = vpop.f32.mrf.mxu0
    %v860 = vadd.f32 0.0, %v859
    %v861 = vpop.f32.mrf.mxu0
    %v862 = vpop.f32.mrf.mxu0
    %v863 = vadd.f32 0.0, %v862
    %v864 = vpop.f32.mrf.mxu0
    %865 = vmatprep.mubr.bf16.mxu0 0
    %866 = vmatmul.mubr.bf16.gmra.mxu0 %v100
    %v867 = vpop.f32.mrf.mxu0
    %v868 = vadd.f32 0.0, %v867
    %v869 = vpop.f32.mrf.mxu0
    %v870 = vpop.f32.mrf.mxu0
    %v871 = vadd.f32 0.0, %v870
    %v872 = vpop.f32.mrf.mxu0
    %873 = vdwg.mxu0
    %v874 = vmul.f32 %v860, %v214
    %v875 = vmul.f32 %v863, %v215
    %v876 = vmul.f32 %v868, %v216
    %v877 = vmul.f32 %v871, %v217
    %v894 = vunpack.c.l.b16 %v703
    %v895 = vunpack.c.l.b16 %v704
    %v896 = vunpack.c.l.b16 %v705
    %v897 = vunpack.c.l.b16 %v706
    %v898 = vunpack.c.l.b16 %v707
    %v899 = vunpack.c.l.b16 %v708
    %v900 = vunpack.c.l.b16 %v709
    %v901 = vunpack.c.l.b16 %v710
    %v902 = vunpack.c.l.b16 %v711
    %v903 = vunpack.c.l.b16 %v712
    %v904 = vunpack.c.l.b16 %v713
    %v905 = vunpack.c.l.b16 %v714
    %v906 = vunpack.c.l.b16 %v715
    %v907 = vunpack.c.l.b16 %v716
    %v908 = vunpack.c.l.b16 %v717
    %v909 = vunpack.c.l.b16 %v718
    %v910 = vpack.c.b16 %v895, %v894
    %v911 = vpack.c.b16 %v897, %v896
    %v912 = vpack.c.b16 %v899, %v898
    %v913 = vpack.c.b16 %v901, %v900
    %v914 = vpack.c.b16 %v903, %v902
    %v915 = vpack.c.b16 %v905, %v904
    %v916 = vpack.c.b16 %v907, %v906
    %v917 = vpack.c.b16 %v909, %v908
    %926 = vmatprep.subr.bf16.mxu0 0
    %927 = vmatpush1.bf16.msra.mxu0 %v917
    %928 = vmatprep.subr.bf16.mxu0 0
    %929 = vmatpush1.bf16.msra.mxu0 %v916
    %930 = vmatprep.subr.bf16.mxu0 0
    %931 = vmatpush1.bf16.msra.mxu0 %v915
    %932 = vmatprep.subr.bf16.mxu0 0
    %933 = vmatpush1.bf16.msra.mxu0 %v914
    %934 = vmatprep.subr.bf16.mxu0 0
    %935 = vmatpush1.bf16.msra.mxu0 %v913
    %936 = vmatprep.subr.bf16.mxu0 0
    %937 = vmatpush1.bf16.msra.mxu0 %v912
    %938 = vmatprep.subr.bf16.mxu0 0
    %939 = vmatpush1.bf16.msra.mxu0 %v911
    %940 = vmatprep.subr.bf16.mxu0 0
    %941 = vmatpush1.bf16.msra.mxu0 %v910
    %942 = vmatprep.subr.bf16.mxu0 0
    %943 = vmatpush2.bf16.msra.mxu0 0
    %944 = vmatprep.subr.bf16.mxu0 0
    %945 = vmatpush2.bf16.msra.mxu0 0
    %946 = vmatprep.subr.bf16.mxu0 0
    %947 = vmatpush2.bf16.msra.mxu0 0
    %948 = vmatprep.subr.bf16.mxu0 0
    %949 = vmatpush2.bf16.msra.mxu0 0
    %950 = vmatprep.subr.bf16.mxu0 0
    %951 = vmatpush2.bf16.msra.mxu0 0
    %952 = vmatprep.subr.bf16.mxu0 0
    %953 = vmatpush2.bf16.msra.mxu0 0
    %954 = vmatprep.subr.bf16.mxu0 0
    %955 = vmatpush2.bf16.msra.mxu0 0
    %956 = vmatprep.subr.bf16.mxu0 0
    %957 = vmatpush2.bf16.msra.mxu0 0
    %958 = vmatprep.mubr.bf16.mxu0 0
    %959 = vmatmul.mubr.bf16.gmra.mxu0 %v685
    %v960 = vpop.f32.mrf.mxu0
    %v961 = vadd.f32 %v874, %v960
    %v962 = vpop.f32.mrf.mxu0
    %v963 = vpop.f32.mrf.mxu0
    %v964 = vadd.f32 %v875, %v963
    %v965 = vpop.f32.mrf.mxu0
    %966 = vmatprep.mubr.bf16.mxu0 0
    %967 = vmatmul.mubr.bf16.gmra.mxu0 %v686
    %v968 = vpop.f32.mrf.mxu0
    %v969 = vadd.f32 %v876, %v968
    %v970 = vpop.f32.mrf.mxu0
    %v971 = vpop.f32.mrf.mxu0
    %v972 = vadd.f32 %v877, %v971
    %v973 = vpop.f32.mrf.mxu0
    %974 = vdwg.mxu0
    %v975 = vld [vmem:[#allocation2 + $0x68] sm:$0xf]
    %v976 = vld [vmem:[#allocation2 + $0x6c] sm:$0xf]
    %v977 = vld [vmem:[#allocation2 + $0x70] sm:$0xf]
    %v978 = vld [vmem:[#allocation2 + $0x74] sm:$0xf]
    %v979 = vld [vmem:[#allocation2 + $0x78] sm:$0xf]
    %v980 = vld [vmem:[#allocation2 + $0x7c] sm:$0xf]
    %v981 = vld [vmem:[#allocation2 + $0x80] sm:$0xf]
    %v982 = vld [vmem:[#allocation2 + $0x84] sm:$0xf]
    %v983 = vld [vmem:[#allocation2 + $0x88] sm:$0xf]
    %v984 = vld [vmem:[#allocation2 + $0x8c] sm:$0xf]
    %v985 = vld [vmem:[#allocation2 + $0x90] sm:$0xf]
    %v986 = vld [vmem:[#allocation2 + $0x94] sm:$0xf]
    %v987 = vld [vmem:[#allocation2 + $0x98] sm:$0xf]
    %v988 = vld [vmem:[#allocation2 + $0x9c] sm:$0xf]
    %v989 = vld [vmem:[#allocation2 + $0xa0] sm:$0xf]
    %v990 = vld [vmem:[#allocation2 + $0xa4] sm:$0xf]
    %v1007 = vunpack.c.l.b16 %v975
    %v1008 = vunpack.c.l.b16 %v976
    %v1009 = vunpack.c.l.b16 %v977
    %v1010 = vunpack.c.l.b16 %v978
    %v1011 = vunpack.c.l.b16 %v979
    %v1012 = vunpack.c.l.b16 %v980
    %v1013 = vunpack.c.l.b16 %v981
    %v1014 = vunpack.c.l.b16 %v982
    %v1015 = vunpack.c.l.b16 %v983
    %v1016 = vunpack.c.l.b16 %v984
    %v1017 = vunpack.c.l.b16 %v985
    %v1018 = vunpack.c.l.b16 %v986
    %v1019 = vunpack.c.l.b16 %v987
    %v1020 = vunpack.c.l.b16 %v988
    %v1021 = vunpack.c.l.b16 %v989
    %v1022 = vunpack.c.l.b16 %v990
    %v1023 = vpack.c.b16 %v1008, %v1007
    %v1024 = vpack.c.b16 %v1010, %v1009
    %v1025 = vpack.c.b16 %v1012, %v1011
    %v1026 = vpack.c.b16 %v1014, %v1013
    %v1027 = vpack.c.b16 %v1016, %v1015
    %v1028 = vpack.c.b16 %v1018, %v1017
    %v1029 = vpack.c.b16 %v1020, %v1019
    %v1030 = vpack.c.b16 %v1022, %v1021
    %1039 = vmatprep.subr.bf16.mxu0 0
    %1040 = vmatpush1.bf16.msra.mxu0 %v1030
    %1041 = vmatprep.subr.bf16.mxu0 0
    %1042 = vmatpush1.bf16.msra.mxu0 %v1029
    %1043 = vmatprep.subr.bf16.mxu0 0
    %1044 = vmatpush1.bf16.msra.mxu0 %v1028
    %1045 = vmatprep.subr.bf16.mxu0 0
    %1046 = vmatpush1.bf16.msra.mxu0 %v1027
    %1047 = vmatprep.subr.bf16.mxu0 0
    %1048 = vmatpush1.bf16.msra.mxu0 %v1026
    %1049 = vmatprep.subr.bf16.mxu0 0
    %1050 = vmatpush1.bf16.msra.mxu0 %v1025
    %1051 = vmatprep.subr.bf16.mxu0 0
    %1052 = vmatpush1.bf16.msra.mxu0 %v1024
    %1053 = vmatprep.subr.bf16.mxu0 0
    %1054 = vmatpush1.bf16.msra.mxu0 %v1023
    %1055 = vmatprep.subr.bf16.mxu0 0
    %1056 = vmatpush2.bf16.msra.mxu0 0
    %1057 = vmatprep.subr.bf16.mxu0 0
    %1058 = vmatpush2.bf16.msra.mxu0 0
    %1059 = vmatprep.subr.bf16.mxu0 0
    %1060 = vmatpush2.bf16.msra.mxu0 0
    %1061 = vmatprep.subr.bf16.mxu0 0
    %1062 = vmatpush2.bf16.msra.mxu0 0
    %1063 = vmatprep.subr.bf16.mxu0 0
    %1064 = vmatpush2.bf16.msra.mxu0 0
    %1065 = vmatprep.subr.bf16.mxu0 0
    %1066 = vmatpush2.bf16.msra.mxu0 0
    %1067 = vmatprep.subr.bf16.mxu0 0
    %1068 = vmatpush2.bf16.msra.mxu0 0
    %1069 = vmatprep.subr.bf16.mxu0 0
    %1070 = vmatpush2.bf16.msra.mxu0 0
    %1071 = vmatprep.mubr.bf16.mxu0 0
    %1072 = vmatmul.mubr.bf16.gmra.mxu0 %v685
    %v1073 = vpop.f32.mrf.mxu0
    %v1074 = vadd.f32 0.0, %v1073
    %v1075 = vpop.f32.mrf.mxu0
    %v1076 = vpop.f32.mrf.mxu0
    %v1077 = vadd.f32 0.0, %v1076
    %v1078 = vpop.f32.mrf.mxu0
    %1079 = vmatprep.mubr.bf16.mxu0 0
    %1080 = vmatmul.mubr.bf16.gmra.mxu0 %v686
    %v1081 = vpop.f32.mrf.mxu0
    %v1082 = vadd.f32 0.0, %v1081
    %v1083 = vpop.f32.mrf.mxu0
    %v1084 = vpop.f32.mrf.mxu0
    %v1085 = vadd.f32 0.0, %v1084
    %v1086 = vpop.f32.mrf.mxu0
    %1087 = vdwg.mxu0
    %v1088 = vpack.c.bf16 %v1077, %v1074
    %v1089 = vpack.c.bf16 %v1085, %v1082
    %1090 = vmatprep.subr.bf16.mxu0 0
    %1091 = vmatpush1.bf16.msra.mxu0 0
    %1092 = vmatprep.subr.bf16.mxu0 0
    %1093 = vmatpush1.bf16.msra.mxu0 0
    %1094 = vmatprep.subr.bf16.mxu0 0
    %1095 = vmatpush1.bf16.msra.mxu0 0
    %1096 = vmatprep.subr.bf16.mxu0 0
    %1097 = vmatpush1.bf16.msra.mxu0 0
    %1098 = vmatprep.subr.bf16.mxu0 0
    %1099 = vmatpush1.bf16.msra.mxu0 0
    %1100 = vmatprep.subr.bf16.mxu0 0
    %1101 = vmatpush1.bf16.msra.mxu0 0
    %1102 = vmatprep.subr.bf16.mxu0 0
    %1103 = vmatpush1.bf16.msra.mxu0 %v1089
    %1104 = vmatprep.subr.bf16.mxu0 0
    %1105 = vmatpush1.bf16.msra.mxu0 %v1088
    %1106 = vmatprep.subr.bf16.mxu0 0
    %1107 = vmatpush2.bf16.msra.mxu0 0
    %1108 = vmatprep.subr.bf16.mxu0 0
    %1109 = vmatpush2.bf16.msra.mxu0 0
    %1110 = vmatprep.subr.bf16.mxu0 0
    %1111 = vmatpush2.bf16.msra.mxu0 0
    %1112 = vmatprep.subr.bf16.mxu0 0
    %1113 = vmatpush2.bf16.msra.mxu0 0
    %1114 = vmatprep.subr.bf16.mxu0 0
    %1115 = vmatpush2.bf16.msra.mxu0 0
    %1116 = vmatprep.subr.bf16.mxu0 0
    %1117 = vmatpush2.bf16.msra.mxu0 0
    %1118 = vmatprep.subr.bf16.mxu0 0
    %1119 = vmatpush2.bf16.msra.mxu0 0
    %1120 = vmatprep.subr.bf16.mxu0 0
    %1121 = vmatpush2.bf16.msra.mxu0 0
    %1122 = vmatprep.mubr.bf16.mxu0 0
    %1123 = vmatmul.mubr.bf16.gmra.mxu0 %v304
    %v1124 = vpop.f32.mrf.mxu0
    %v1125 = vadd.f32 0.0, %v1124
    %v1126 = vpop.f32.mrf.mxu0
    %v1127 = vpop.f32.mrf.mxu0
    %v1128 = vadd.f32 0.0, %v1127
    %v1129 = vpop.f32.mrf.mxu0
    %1130 = vdwg.mxu0
    %v1131 = vmul.f32 %v1125, %v398
    %v1132 = vmul.f32 %v1128, %v399
    %v1149 = vunpack.c.l.b16 %v687
    %v1150 = vunpack.c.l.b16 %v688
    %v1151 = vunpack.c.l.b16 %v689
    %v1152 = vunpack.c.l.b16 %v690
    %v1153 = vunpack.c.l.b16 %v691
    %v1154 = vunpack.c.l.b16 %v692
    %v1155 = vunpack.c.l.b16 %v693
    %v1156 = vunpack.c.l.b16 %v694
    %v1157 = vunpack.c.l.b16 %v695
    %v1158 = vunpack.c.l.b16 %v696
    %v1159 = vunpack.c.l.b16 %v697
    %v1160 = vunpack.c.l.b16 %v698
    %v1161 = vunpack.c.l.b16 %v699
    %v1162 = vunpack.c.l.b16 %v700
    %v1163 = vunpack.c.l.b16 %v701
    %v1164 = vunpack.c.l.b16 %v702
    %v1165 = vpack.c.b16 %v1150, %v1149
    %v1166 = vpack.c.b16 %v1152, %v1151
    %v1167 = vpack.c.b16 %v1154, %v1153
    %v1168 = vpack.c.b16 %v1156, %v1155
    %v1169 = vpack.c.b16 %v1158, %v1157
    %v1170 = vpack.c.b16 %v1160, %v1159
    %v1171 = vpack.c.b16 %v1162, %v1161
    %v1172 = vpack.c.b16 %v1164, %v1163
    %1181 = vmatprep.subr.bf16.mxu0 0
    %1182 = vmatpush1.bf16.msra.mxu0 %v1172
    %1183 = vmatprep.subr.bf16.mxu0 0
    %1184 = vmatpush1.bf16.msra.mxu0 %v1171
    %1185 = vmatprep.subr.bf16.mxu0 0
    %1186 = vmatpush1.bf16.msra.mxu0 %v1170
    %1187 = vmatprep.subr.bf16.mxu0 0
    %1188 = vmatpush1.bf16.msra.mxu0 %v1169
    %1189 = vmatprep.subr.bf16.mxu0 0
    %1190 = vmatpush1.bf16.msra.mxu0 %v1168
    %1191 = vmatprep.subr.bf16.mxu0 0
    %1192 = vmatpush1.bf16.msra.mxu0 %v1167
    %1193 = vmatprep.subr.bf16.mxu0 0
    %1194 = vmatpush1.bf16.msra.mxu0 %v1166
    %1195 = vmatprep.subr.bf16.mxu0 0
    %1196 = vmatpush1.bf16.msra.mxu0 %v1165
    %1197 = vmatprep.subr.bf16.mxu0 0
    %1198 = vmatpush2.bf16.msra.mxu0 0
    %1199 = vmatprep.subr.bf16.mxu0 0
    %1200 = vmatpush2.bf16.msra.mxu0 0
    %1201 = vmatprep.subr.bf16.mxu0 0
    %1202 = vmatpush2.bf16.msra.mxu0 0
    %1203 = vmatprep.subr.bf16.mxu0 0
    %1204 = vmatpush2.bf16.msra.mxu0 0
    %1205 = vmatprep.subr.bf16.mxu0 0
    %1206 = vmatpush2.bf16.msra.mxu0 0
    %1207 = vmatprep.subr.bf16.mxu0 0
    %1208 = vmatpush2.bf16.msra.mxu0 0
    %1209 = vmatprep.subr.bf16.mxu0 0
    %1210 = vmatpush2.bf16.msra.mxu0 0
    %1211 = vmatprep.subr.bf16.mxu0 0
    %1212 = vmatpush2.bf16.msra.mxu0 0
    %1213 = vmatprep.mubr.bf16.mxu0 0
    %1214 = vmatmul.mubr.bf16.gmra.mxu0 %v610
    %v1215 = vpop.f32.mrf.mxu0
    %v1216 = vadd.f32 %v1131, %v1215
    %v1217 = vpop.f32.mrf.mxu0
    %v1218 = vpop.f32.mrf.mxu0
    %v1219 = vadd.f32 %v1132, %v1218
    %v1220 = vpop.f32.mrf.mxu0
    %1221 = vdwg.mxu0
    %v1222 = vld [vmem:[#allocation2 + $0xa8] sm:$0xf]
    %v1223 = vld [vmem:[#allocation2 + $0xac] sm:$0xf]
    %v1224 = vld [vmem:[#allocation2 + $0xb0] sm:$0xf]
    %v1225 = vld [vmem:[#allocation2 + $0xb4] sm:$0xf]
    %v1226 = vld [vmem:[#allocation2 + $0xb8] sm:$0xf]
    %v1227 = vld [vmem:[#allocation2 + $0xbc] sm:$0xf]
    %v1228 = vld [vmem:[#allocation2 + $0xc0] sm:$0xf]
    %v1229 = vld [vmem:[#allocation2 + $0xc4] sm:$0xf]
    %v1230 = vld [vmem:[#allocation2 + $0xc8] sm:$0xf]
    %v1231 = vld [vmem:[#allocation2 + $0xcc] sm:$0xf]
    %v1232 = vld [vmem:[#allocation2 + $0xd0] sm:$0xf]
    %v1233 = vld [vmem:[#allocation2 + $0xd4] sm:$0xf]
    %v1234 = vld [vmem:[#allocation2 + $0xd8] sm:$0xf]
    %v1235 = vld [vmem:[#allocation2 + $0xdc] sm:$0xf]
    %v1236 = vld [vmem:[#allocation2 + $0xe0] sm:$0xf]
    %v1237 = vld [vmem:[#allocation2 + $0xe4] sm:$0xf]
    %v1254 = vunpack.c.l.b16 %v1222
    %v1255 = vunpack.c.l.b16 %v1223
    %v1256 = vunpack.c.l.b16 %v1224
    %v1257 = vunpack.c.l.b16 %v1225
    %v1258 = vunpack.c.l.b16 %v1226
    %v1259 = vunpack.c.l.b16 %v1227
    %v1260 = vunpack.c.l.b16 %v1228
    %v1261 = vunpack.c.l.b16 %v1229
    %v1262 = vunpack.c.l.b16 %v1230
    %v1263 = vunpack.c.l.b16 %v1231
    %v1264 = vunpack.c.l.b16 %v1232
    %v1265 = vunpack.c.l.b16 %v1233
    %v1266 = vunpack.c.l.b16 %v1234
    %v1267 = vunpack.c.l.b16 %v1235
    %v1268 = vunpack.c.l.b16 %v1236
    %v1269 = vunpack.c.l.b16 %v1237
    %v1270 = vpack.c.b16 %v1255, %v1254
    %v1271 = vpack.c.b16 %v1257, %v1256
    %v1272 = vpack.c.b16 %v1259, %v1258
    %v1273 = vpack.c.b16 %v1261, %v1260
    %v1274 = vpack.c.b16 %v1263, %v1262
    %v1275 = vpack.c.b16 %v1265, %v1264
    %v1276 = vpack.c.b16 %v1267, %v1266
    %v1277 = vpack.c.b16 %v1269, %v1268
    %1286 = vmatprep.subr.bf16.mxu0 0
    %1287 = vmatpush1.bf16.msra.mxu0 %v1277
    %1288 = vmatprep.subr.bf16.mxu0 0
    %1289 = vmatpush1.bf16.msra.mxu0 %v1276
    %1290 = vmatprep.subr.bf16.mxu0 0
    %1291 = vmatpush1.bf16.msra.mxu0 %v1275
    %1292 = vmatprep.subr.bf16.mxu0 0
    %1293 = vmatpush1.bf16.msra.mxu0 %v1274
    %1294 = vmatprep.subr.bf16.mxu0 0
    %1295 = vmatpush1.bf16.msra.mxu0 %v1273
    %1296 = vmatprep.subr.bf16.mxu0 0
    %1297 = vmatpush1.bf16.msra.mxu0 %v1272
    %1298 = vmatprep.subr.bf16.mxu0 0
    %1299 = vmatpush1.bf16.msra.mxu0 %v1271
    %1300 = vmatprep.subr.bf16.mxu0 0
    %1301 = vmatpush1.bf16.msra.mxu0 %v1270
    %1302 = vmatprep.subr.bf16.mxu0 0
    %1303 = vmatpush2.bf16.msra.mxu0 0
    %1304 = vmatprep.subr.bf16.mxu0 0
    %1305 = vmatpush2.bf16.msra.mxu0 0
    %1306 = vmatprep.subr.bf16.mxu0 0
    %1307 = vmatpush2.bf16.msra.mxu0 0
    %1308 = vmatprep.subr.bf16.mxu0 0
    %1309 = vmatpush2.bf16.msra.mxu0 0
    %1310 = vmatprep.subr.bf16.mxu0 0
    %1311 = vmatpush2.bf16.msra.mxu0 0
    %1312 = vmatprep.subr.bf16.mxu0 0
    %1313 = vmatpush2.bf16.msra.mxu0 0
    %1314 = vmatprep.subr.bf16.mxu0 0
    %1315 = vmatpush2.bf16.msra.mxu0 0
    %1316 = vmatprep.subr.bf16.mxu0 0
    %1317 = vmatpush2.bf16.msra.mxu0 0
    %1318 = vmatprep.mubr.bf16.mxu0 0
    %1319 = vmatmul.mubr.bf16.gmra.mxu0 %v610
    %v1320 = vpop.f32.mrf.mxu0
    %v1321 = vadd.f32 0.0, %v1320
    %v1322 = vpop.f32.mrf.mxu0
    %v1323 = vpop.f32.mrf.mxu0
    %v1324 = vadd.f32 0.0, %v1323
    %v1325 = vpop.f32.mrf.mxu0
    %1326 = vdwg.mxu0
    %v1327 = vpack.c.bf16 %v1324, %v1321
    %1328 = vmatprep.subr.bf16.mxu0 0
    %1329 = vmatpush1.bf16.msra.mxu0 0
    %1330 = vmatprep.subr.bf16.mxu0 0
    %1331 = vmatpush1.bf16.msra.mxu0 0
    %1332 = vmatprep.subr.bf16.mxu0 0
    %1333 = vmatpush1.bf16.msra.mxu0 0
    %1334 = vmatprep.subr.bf16.mxu0 0
    %1335 = vmatpush1.bf16.msra.mxu0 0
    %1336 = vmatprep.subr.bf16.mxu0 0
    %1337 = vmatpush1.bf16.msra.mxu0 0
    %1338 = vmatprep.subr.bf16.mxu0 0
    %1339 = vmatpush1.bf16.msra.mxu0 0
    %1340 = vmatprep.subr.bf16.mxu0 0
    %1341 = vmatpush1.bf16.msra.mxu0 0
    %1342 = vmatprep.subr.bf16.mxu0 0
    %1343 = vmatpush1.bf16.msra.mxu0 %v1327
    %1344 = vmatprep.subr.bf16.mxu0 0
    %1345 = vmatpush2.bf16.msra.mxu0 0
    %1346 = vmatprep.subr.bf16.mxu0 0
    %1347 = vmatpush2.bf16.msra.mxu0 0
    %1348 = vmatprep.subr.bf16.mxu0 0
    %1349 = vmatpush2.bf16.msra.mxu0 0
    %1350 = vmatprep.subr.bf16.mxu0 0
    %1351 = vmatpush2.bf16.msra.mxu0 0
    %1352 = vmatprep.subr.bf16.mxu0 0
    %1353 = vmatpush2.bf16.msra.mxu0 0
    %1354 = vmatprep.subr.bf16.mxu0 0
    %1355 = vmatpush2.bf16.msra.mxu0 0
    %1356 = vmatprep.subr.bf16.mxu0 0
    %1357 = vmatpush2.bf16.msra.mxu0 0
    %1358 = vmatprep.subr.bf16.mxu0 0
    %1359 = vmatpush2.bf16.msra.mxu0 0
    %1360 = vmatprep.mubr.bf16.mxu0 0
    %1361 = vmatmul.mubr.bf16.gmra.mxu0 %v460
    %v1362 = vpop.f32.mrf.mxu0
    %v1363 = vadd.f32 0.0, %v1362
    %v1364 = vpop.f32.mrf.mxu0
    %v1365 = vpop.f32.mrf.mxu0
    %v1366 = vadd.f32 0.0, %v1365
    %v1367 = vpop.f32.mrf.mxu0
    %1368 = vdwg.mxu0
    %v1369 = vmul.f32 %v1363, %v554
    %v1370 = vmul.f32 %v1366, %v555
    %v1371 = vadd.f32 %v1216, %v1369
    %v1372 = vadd.f32 %v1219, %v1370
    %v1373 = vadd.f32 %v1371, %v1372
    %v1374 = vrot.slane %v1373, 4
    %v1375 = vadd.f32 %v1373, %v1374
    %v1376 = vrot.slane %v1375, 2
    %v1377 = vadd.f32 %v1375, %v1376
    %v1378 = vrot.slane %v1377, 1
    %v1379 = vadd.f32 %v1377, %v1378
    %v1380 = vmul.f32 %v1379, 0.0625
    %v1381 = vmul.f32 %v1371, %v1371
    %v1382 = vmul.f32 %v1372, %v1372
    %v1383 = vadd.f32 %v1381, %v1382
    %v1384 = vrot.slane %v1383, 4
    %v1385 = vadd.f32 %v1383, %v1384
    %v1386 = vrot.slane %v1385, 2
    %v1387 = vadd.f32 %v1385, %v1386
    %v1388 = vrot.slane %v1387, 1
    %v1389 = vadd.f32 %v1387, %v1388
    %v1390 = vmul.f32 %v1389, 0.0625
    %v1391 = vmul.f32 %v1380, %v1380
    %v1392 = vsub.f32 %v1390, %v1391
    %v1393 = vsub.f32 %v1371, %v1380
    %v1394 = vsub.f32 %v1372, %v1380
    %v1395 = vadd.f32 %v1392, 1.0
    %v1396 = vrsqrt.pop %v1395
    %v1397 = vmul.f32 %v1393, %v1396
    %v1398 = vmul.f32 %v1394, %v1396
    %v1399 = vld [vmem:[#allocation5 + $0x60] sm:$0x1]
    %v1400 = vlaneseq
    %v1401 = vshrl.u32 %v1400, 7
    %v1402 = vsub.s32 0, %v1401
    %v1403 = vrot.slane %v1399, %v1402
    %v1404 = vmul.f32 %v1397, %v1403
    %v1405 = vmul.f32 %v1398, %v1403
    %v1406 = vld [vmem:[#allocation5 + $0x68] sm:$0x1]
    %v1407 = vlaneseq
    %v1408 = vshrl.u32 %v1407, 7
    %v1409 = vsub.s32 0, %v1408
    %v1410 = vrot.slane %v1406, %v1409
    %v1411 = vadd.f32 %v1404, %v1410
    %v1412 = vadd.f32 %v1405, %v1410
    %vm1413 = vcmp.ge.f32.partialorder %v1411, 0.0
    %vm1414 = vcmp.ge.f32.partialorder %v1412, 0.0
    %v1415 = vmul.f32 %v1411, 0.01
    %v1416 = vmul.f32 %v1412, 0.01
    %v1417 = vsel %vm1413, %v1411, %v1415
    %v1418 = vsel %vm1414, %v1412, %v1416
    %v1419 = vpack.c.bf16 %v1418, %v1417
    %v1420 = vadd.f32 %v961, %v964
    %v1421 = vadd.f32 %v1420, %v969
    %v1422 = vadd.f32 %v1421, %v972
    %v1423 = vrot.slane %v1422, 4
    %v1424 = vadd.f32 %v1422, %v1423
    %v1425 = vrot.slane %v1424, 2
    %v1426 = vadd.f32 %v1424, %v1425
    %v1427 = vrot.slane %v1426, 1
    %v1428 = vadd.f32 %v1426, %v1427
    %v1429 = vmul.f32 %v1428, 0.041666668
    %v1430 = vmul.f32 %v961, %v961
    %v1431 = vmul.f32 %v964, %v964
    %v1432 = vmul.f32 %v969, %v969
    %v1433 = vmul.f32 %v972, %v972
    %v1434 = vadd.f32 %v1430, %v1431
    %v1435 = vadd.f32 %v1434, %v1432
    %v1436 = vadd.f32 %v1435, %v1433
    %v1437 = vrot.slane %v1436, 4
    %v1438 = vadd.f32 %v1436, %v1437
    %v1439 = vrot.slane %v1438, 2
    %v1440 = vadd.f32 %v1438, %v1439
    %v1441 = vrot.slane %v1440, 1
    %v1442 = vadd.f32 %v1440, %v1441
    %v1443 = vmul.f32 %v1442, 0.041666668
    %v1444 = vmul.f32 %v1429, %v1429
    %v1445 = vsub.f32 %v1443, %v1444
    %v1446 = vsub.f32 %v961, %v1429
    %v1447 = vsub.f32 %v964, %v1429
    %v1448 = vsub.f32 %v969, %v1429
    %v1449 = vsub.f32 %v972, %v1429
    %v1450 = vadd.f32 %v1445, 1.0
    %v1451 = vrsqrt.pop %v1450
    %v1452 = vmul.f32 %v1446, %v1451
    %v1453 = vmul.f32 %v1447, %v1451
    %v1454 = vmul.f32 %v1448, %v1451
    %v1455 = vmul.f32 %v1449, %v1451
    %v1456 = vld [vmem:[#allocation5 + $0x70] sm:$0x1]
    %v1457 = vlaneseq
    %v1458 = vshrl.u32 %v1457, 7
    %v1459 = vsub.s32 0, %v1458
    %v1460 = vrot.slane %v1456, %v1459
    %v1461 = vmul.f32 %v1452, %v1460
    %v1462 = vmul.f32 %v1453, %v1460
    %v1463 = vmul.f32 %v1454, %v1460
    %v1464 = vmul.f32 %v1455, %v1460
    %v1465 = vld [vmem:[#allocation5 + $0x78] sm:$0x1]
    %v1466 = vlaneseq
    %v1467 = vshrl.u32 %v1466, 7
    %v1468 = vsub.s32 0, %v1467
    %v1469 = vrot.slane %v1465, %v1468
    %v1470 = vadd.f32 %v1461, %v1469
    %v1471 = vadd.f32 %v1462, %v1469
    %v1472 = vadd.f32 %v1463, %v1469
    %v1473 = vadd.f32 %v1464, %v1469
    %vm1474 = vcmp.ge.f32.partialorder %v1470, 0.0
    %vm1475 = vcmp.ge.f32.partialorder %v1471, 0.0
    %vm1476 = vcmp.ge.f32.partialorder %v1472, 0.0
    %vm1477 = vcmp.ge.f32.partialorder %v1473, 0.0
    %v1478 = vmul.f32 %v1470, 0.01
    %v1479 = vmul.f32 %v1471, 0.01
    %v1480 = vmul.f32 %v1472, 0.01
    %v1481 = vmul.f32 %v1473, 0.01
    %v1482 = vsel %vm1474, %v1470, %v1478
    %v1483 = vsel %vm1475, %v1471, %v1479
    %v1484 = vsel %vm1476, %v1472, %v1480
    %v1485 = vsel %vm1477, %v1473, %v1481
    %v1486 = vpack.c.bf16 %v1483, %v1482
    %v1487 = vpack.c.bf16 %v1485, %v1484
    %v1488 = vld [vmem:[#allocation2 + $0x168] sm:$0xf]
    %v1489 = vld [vmem:[#allocation2 + $0x16c] sm:$0xf]
    %v1490 = vld [vmem:[#allocation2 + $0x170] sm:$0xf]
    %v1491 = vld [vmem:[#allocation2 + $0x174] sm:$0xf]
    %v1492 = vld [vmem:[#allocation2 + $0x178] sm:$0xf]
    %v1493 = vld [vmem:[#allocation2 + $0x17c] sm:$0xf]
    %v1494 = vld [vmem:[#allocation2 + $0x180] sm:$0xf]
    %v1495 = vld [vmem:[#allocation2 + $0x184] sm:$0xf]
    %v1496 = vld [vmem:[#allocation2 + $0x188] sm:$0xf]
    %v1497 = vld [vmem:[#allocation2 + $0x18c] sm:$0xf]
    %v1498 = vld [vmem:[#allocation2 + $0x190] sm:$0xf]
    %v1499 = vld [vmem:[#allocation2 + $0x194] sm:$0xf]
    %v1500 = vld [vmem:[#allocation2 + $0x198] sm:$0xf]
    %v1501 = vld [vmem:[#allocation2 + $0x19c] sm:$0xf]
    %v1502 = vld [vmem:[#allocation2 + $0x1a0] sm:$0xf]
    %v1503 = vld [vmem:[#allocation2 + $0x1a4] sm:$0xf]
    %v1504 = vld [vmem:[#allocation5 + $0xb0] sm:$0x1]
    %v1505 = vlaneseq
    %v1506 = vshrl.u32 %v1505, 7
    %v1507 = vsub.s32 0, %v1506
    %v1508 = vrot.slane %v1504, %v1507
    %v1525 = vunpack.c.l.b16 %v1488
    %v1526 = vunpack.c.l.b16 %v1489
    %v1527 = vunpack.c.l.b16 %v1490
    %v1528 = vunpack.c.l.b16 %v1491
    %v1529 = vunpack.c.l.b16 %v1492
    %v1530 = vunpack.c.l.b16 %v1493
    %v1531 = vunpack.c.l.b16 %v1494
    %v1532 = vunpack.c.l.b16 %v1495
    %v1533 = vunpack.c.l.b16 %v1496
    %v1534 = vunpack.c.l.b16 %v1497
    %v1535 = vunpack.c.l.b16 %v1498
    %v1536 = vunpack.c.l.b16 %v1499
    %v1537 = vunpack.c.l.b16 %v1500
    %v1538 = vunpack.c.l.b16 %v1501
    %v1539 = vunpack.c.l.b16 %v1502
    %v1540 = vunpack.c.l.b16 %v1503
    %v1541 = vpack.c.b16 %v1526, %v1525
    %v1542 = vpack.c.b16 %v1528, %v1527
    %v1543 = vpack.c.b16 %v1530, %v1529
    %v1544 = vpack.c.b16 %v1532, %v1531
    %v1545 = vpack.c.b16 %v1534, %v1533
    %v1546 = vpack.c.b16 %v1536, %v1535
    %v1547 = vpack.c.b16 %v1538, %v1537
    %v1548 = vpack.c.b16 %v1540, %v1539
    %1557 = vmatprep.subr.bf16.mxu0 0
    %1558 = vmatpush1.bf16.msra.mxu0 %v1548
    %1559 = vmatprep.subr.bf16.mxu0 0
    %1560 = vmatpush1.bf16.msra.mxu0 %v1547
    %1561 = vmatprep.subr.bf16.mxu0 0
    %1562 = vmatpush1.bf16.msra.mxu0 %v1546
    %1563 = vmatprep.subr.bf16.mxu0 0
    %1564 = vmatpush1.bf16.msra.mxu0 %v1545
    %1565 = vmatprep.subr.bf16.mxu0 0
    %1566 = vmatpush1.bf16.msra.mxu0 %v1544
    %1567 = vmatprep.subr.bf16.mxu0 0
    %1568 = vmatpush1.bf16.msra.mxu0 %v1543
    %1569 = vmatprep.subr.bf16.mxu0 0
    %1570 = vmatpush1.bf16.msra.mxu0 %v1542
    %1571 = vmatprep.subr.bf16.mxu0 0
    %1572 = vmatpush1.bf16.msra.mxu0 %v1541
    %1573 = vmatprep.subr.bf16.mxu0 0
    %1574 = vmatpush2.bf16.msra.mxu0 0
    %1575 = vmatprep.subr.bf16.mxu0 0
    %1576 = vmatpush2.bf16.msra.mxu0 0
    %1577 = vmatprep.subr.bf16.mxu0 0
    %1578 = vmatpush2.bf16.msra.mxu0 0
    %1579 = vmatprep.subr.bf16.mxu0 0
    %1580 = vmatpush2.bf16.msra.mxu0 0
    %1581 = vmatprep.subr.bf16.mxu0 0
    %1582 = vmatpush2.bf16.msra.mxu0 0
    %1583 = vmatprep.subr.bf16.mxu0 0
    %1584 = vmatpush2.bf16.msra.mxu0 0
    %1585 = vmatprep.subr.bf16.mxu0 0
    %1586 = vmatpush2.bf16.msra.mxu0 0
    %1587 = vmatprep.subr.bf16.mxu0 0
    %1588 = vmatpush2.bf16.msra.mxu0 0
    %1589 = vmatprep.mubr.bf16.mxu0 0
    %1590 = vmatmul.mubr.bf16.gmra.mxu0 %v1419
    %v1591 = vpop.f32.mrf.mxu0
    %v1592 = vadd.f32 %v1508, %v1591
    %v1593 = vpop.f32.mrf.mxu0
    %v1594 = vpop.f32.mrf.mxu0
    %v1595 = vadd.f32 %v1508, %v1594
    %v1596 = vpop.f32.mrf.mxu0
    %1597 = vdwg.mxu0
    %1598 = vst [vmem:[#allocation7] sm:$0xff] %v1592
    %1599 = vst [vmem:[#allocation7 + $0x8] sm:$0xff] %v1595
    %v1600 = vld [vmem:[#allocation2 + $0x1a8] sm:$0xf]
    %v1601 = vld [vmem:[#allocation2 + $0x1ac] sm:$0xf]
    %v1602 = vld [vmem:[#allocation2 + $0x1b0] sm:$0xf]
    %v1603 = vld [vmem:[#allocation2 + $0x1b4] sm:$0xf]
    %v1604 = vld [vmem:[#allocation2 + $0x1b8] sm:$0xf]
    %v1605 = vld [vmem:[#allocation2 + $0x1bc] sm:$0xf]
    %v1606 = vld [vmem:[#allocation2 + $0x1c0] sm:$0xf]
    %v1607 = vld [vmem:[#allocation2 + $0x1c4] sm:$0xf]
    %v1608 = vld [vmem:[#allocation2 + $0x1c8] sm:$0xf]
    %v1609 = vld [vmem:[#allocation2 + $0x1cc] sm:$0xf]
    %v1610 = vld [vmem:[#allocation2 + $0x1d0] sm:$0xf]
    %v1611 = vld [vmem:[#allocation2 + $0x1d4] sm:$0xf]
    %v1612 = vld [vmem:[#allocation2 + $0x1d8] sm:$0xf]
    %v1613 = vld [vmem:[#allocation2 + $0x1dc] sm:$0xf]
    %v1614 = vld [vmem:[#allocation2 + $0x1e0] sm:$0xf]
    %v1615 = vld [vmem:[#allocation2 + $0x1e4] sm:$0xf]
    %v1616 = vld [vmem:[#allocation5 + $0xb8] sm:$0x1]
    %v1617 = vlaneseq
    %v1618 = vshrl.u32 %v1617, 7
    %v1619 = vsub.s32 0, %v1618
    %v1620 = vrot.slane %v1616, %v1619
    %v1637 = vunpack.c.l.b16 %v1600
    %v1638 = vunpack.c.l.b16 %v1601
    %v1639 = vunpack.c.l.b16 %v1602
    %v1640 = vunpack.c.l.b16 %v1603
    %v1641 = vunpack.c.l.b16 %v1604
    %v1642 = vunpack.c.l.b16 %v1605
    %v1643 = vunpack.c.l.b16 %v1606
    %v1644 = vunpack.c.l.b16 %v1607
    %v1645 = vunpack.c.l.b16 %v1608
    %v1646 = vunpack.c.l.b16 %v1609
    %v1647 = vunpack.c.l.b16 %v1610
    %v1648 = vunpack.c.l.b16 %v1611
    %v1649 = vunpack.c.l.b16 %v1612
    %v1650 = vunpack.c.l.b16 %v1613
    %v1651 = vunpack.c.l.b16 %v1614
    %v1652 = vunpack.c.l.b16 %v1615
    %v1653 = vpack.c.b16 %v1638, %v1637
    %v1654 = vpack.c.b16 %v1640, %v1639
    %v1655 = vpack.c.b16 %v1642, %v1641
    %v1656 = vpack.c.b16 %v1644, %v1643
    %v1657 = vpack.c.b16 %v1646, %v1645
    %v1658 = vpack.c.b16 %v1648, %v1647
    %v1659 = vpack.c.b16 %v1650, %v1649
    %v1660 = vpack.c.b16 %v1652, %v1651
    %1669 = vmatprep.subr.bf16.mxu0 0
    %1670 = vmatpush1.bf16.msra.mxu0 %v1660
    %1671 = vmatprep.subr.bf16.mxu0 0
    %1672 = vmatpush1.bf16.msra.mxu0 %v1659
    %1673 = vmatprep.subr.bf16.mxu0 0
    %1674 = vmatpush1.bf16.msra.mxu0 %v1658
    %1675 = vmatprep.subr.bf16.mxu0 0
    %1676 = vmatpush1.bf16.msra.mxu0 %v1657
    %1677 = vmatprep.subr.bf16.mxu0 0
    %1678 = vmatpush1.bf16.msra.mxu0 %v1656
    %1679 = vmatprep.subr.bf16.mxu0 0
    %1680 = vmatpush1.bf16.msra.mxu0 %v1655
    %1681 = vmatprep.subr.bf16.mxu0 0
    %1682 = vmatpush1.bf16.msra.mxu0 %v1654
    %1683 = vmatprep.subr.bf16.mxu0 0
    %1684 = vmatpush1.bf16.msra.mxu0 %v1653
    %1685 = vmatprep.subr.bf16.mxu0 0
    %1686 = vmatpush2.bf16.msra.mxu0 0
    %1687 = vmatprep.subr.bf16.mxu0 0
    %1688 = vmatpush2.bf16.msra.mxu0 0
    %1689 = vmatprep.subr.bf16.mxu0 0
    %1690 = vmatpush2.bf16.msra.mxu0 0
    %1691 = vmatprep.subr.bf16.mxu0 0
    %1692 = vmatpush2.bf16.msra.mxu0 0
    %1693 = vmatprep.subr.bf16.mxu0 0
    %1694 = vmatpush2.bf16.msra.mxu0 0
    %1695 = vmatprep.subr.bf16.mxu0 0
    %1696 = vmatpush2.bf16.msra.mxu0 0
    %1697 = vmatprep.subr.bf16.mxu0 0
    %1698 = vmatpush2.bf16.msra.mxu0 0
    %1699 = vmatprep.subr.bf16.mxu0 0
    %1700 = vmatpush2.bf16.msra.mxu0 0
    %1701 = vmatprep.mubr.bf16.mxu0 0
    %1702 = vmatmul.mubr.bf16.gmra.mxu0 %v1486
    %v1703 = vpop.f32.mrf.mxu0
    %v1704 = vadd.f32 %v1620, %v1703
    %v1705 = vpop.f32.mrf.mxu0
    %v1706 = vpop.f32.mrf.mxu0
    %v1707 = vadd.f32 %v1620, %v1706
    %v1708 = vpop.f32.mrf.mxu0
    %1709 = vmatprep.mubr.bf16.mxu0 0
    %1710 = vmatmul.mubr.bf16.gmra.mxu0 %v1487
    %v1711 = vpop.f32.mrf.mxu0
    %v1712 = vadd.f32 %v1620, %v1711
    %v1713 = vpop.f32.mrf.mxu0
    %v1714 = vpop.f32.mrf.mxu0
    %v1715 = vadd.f32 %v1620, %v1714
    %v1716 = vpop.f32.mrf.mxu0
    %1717 = vdwg.mxu0
    %1718 = vst [vmem:[#allocation8] sm:$0xff] %v1704
    %1719 = vst [vmem:[#allocation8 + $0x8] sm:$0xff] %v1707
    %1720 = vst [vmem:[#allocation8 + $0x10] sm:$0xff] %v1712
    %1721 = vst [vmem:[#allocation8 + $0x18] sm:$0xff] %v1715
    // Predicated region
    $region38: #{tpu_custom_call.1} parent=1 // pred_check
      _
    $region39: #{tpu_custom_call.1} parent=1 // pred_check_branch
      %1723 = sbr.rel (0) target = $region41
    $region40: #{tpu_custom_call.1} parent=1 // pred_region
      %s1725 = ssub.s32 256, 256
      %1726 = vsyncadd [#allocation4], %s1725
      %s1727 = sshll.u32 [#allocation7], 4
      %s1728 = int_to_ptr.vmem [resolvable:$true] %s1727
      %1733 = dma.vmem_to_hbm [thread:$0]  %s1728, 256, %s7, [#allocation4], 128, 128, 8
    $region41: #{tpu_custom_call.1} parent=1 // pred_fallthru
      _
    // Predicated region
    $region42: #{tpu_custom_call.1} parent=1 // pred_check
      _
    $region43: #{tpu_custom_call.1} parent=1 // pred_check_branch
      %1735 = sbr.rel (0) target = $region45
    $region44: #{tpu_custom_call.1} parent=1 // pred_region
      %s1737 = ssub.s32 512, 512
      %1738 = vsyncadd [#allocation9], %s1737
      %s1739 = sshll.u32 [#allocation8], 4
      %s1740 = int_to_ptr.vmem [resolvable:$true] %s1739
      %1745 = dma.vmem_to_hbm [thread:$0]  %s1740, 512, %s8, [#allocation9], 128, 128, 8
    $region45: #{tpu_custom_call.1} parent=1 // pred_fallthru
      _
    // Predicated region
    $region46: #{tpu_custom_call.1} parent=1 // pred_check
      _
    $region47: #{tpu_custom_call.1} parent=1 // pred_check_branch
      %1747 = sbr.rel (0) target = $region49
    $region48: #{tpu_custom_call.1} parent=1 // pred_region
      %1748 = dma.done [#allocation4], 256
    $region49: #{tpu_custom_call.1} parent=1 // pred_fallthru
      _
    // Predicated region
    $region50: #{tpu_custom_call.1} parent=1 // pred_check
      _
    $region51: #{tpu_custom_call.1} parent=1 // pred_check_branch
      %1750 = sbr.rel (0) target = $region53
    $region52: #{tpu_custom_call.1} parent=1 // pred_region
      %1751 = dma.done [#allocation9], 512
    $region53: #{tpu_custom_call.1} parent=1 // pred_fallthru
      _
    %1752 = vsyncpa [#allocation3], 1
    %1753 = vsyncpa [#allocation6], 1
    %1754 = vsyncpa [#allocation4], 1
    %1755 = vsyncpa [#allocation9], 1

</llo_original>
